<compile_context>
chip_gen: v7x
topology: tpu7x:2x2x1
jax: 0.10.0
libtpu: 0.0.40
codegen_flags: <defaults>
</compile_context>

<pallas_src>
import functools

import jax
import jax.numpy as jnp
from jax.experimental import pallas as pl
from jax.experimental.pallas import tpu as pltpu


# Hyper-parameters implied by MyModel.__init__ (small, deterministic config).
HPAR = {
    "inputShape": (16, 4, 2),          # (timeBins, inp_chan, stim_number)
    "batch_norm_cnn_slot": -1,
    "instance_norm_slot": -1,
    "layer_norm": False,
    "batch_norm_flat": False,
    "conv_block": {"filter": [8, 8], "kernel": [3, 3], "pool": [2, 2]},
    "fc_block": {"dims": [32], "dropFrac": 0.0},
    "outputSize": 5,
}

_VMEM = pl.BlockSpec(memory_space=pltpu.MemorySpace.VMEM)


# ------------------------------ fused kernel ------------------------------- #

def _fused_forward_kernel(*refs, S, conv_kp, n_fc):
    """Whole MyModel.forward in one kernel.

    Ref layout (inputs then output):
      x_ref                                   (S, T, B, Cin)   time-major
      [wc_j (S, K_j*Cin_j, Cout_j), bc_j (S, 1, Cout_j)]   per conv layer j
      wf0 (S*Lp_last, C_last, F0), bf0 (1, F0)             first FC, flatten folded
      [wf_i (F_{i-1}, F_i), bf_i (1, F_i)]                 remaining FC layers
      o_ref                                   (B, F_out)
    """
    n_conv = len(conv_kp)
    x_ref = refs[0]
    o_ref = refs[-1]
    idx = 1
    conv_w, conv_b = [], []
    for _ in range(n_conv):
        conv_w.append(refs[idx]); conv_b.append(refs[idx + 1]); idx += 2
    wf0_ref, bf0_ref = refs[idx], refs[idx + 1]; idx += 2
    fc_rest = []
    for _ in range(n_fc - 1):
        fc_rest.append((refs[idx], refs[idx + 1])); idx += 2

    B = x_ref.shape[2]
    F0 = wf0_ref.shape[-1]
    h1 = jnp.zeros((B, F0), jnp.float32)        # first-FC pre-activation accum

    for s in range(S):                          # static unroll over stims
        h = x_ref[s]                            # (T, B, Cin)
        for j, (K, pool) in enumerate(conv_kp):
            T = h.shape[0]
            Lout = T - K + 1
            # im2col over the K taps along lanes -> ONE matmul per conv layer.
            xcol = jnp.concatenate([h[k:k + Lout] for k in range(K)], axis=-1)
            acc = jnp.einsum("lbf,fo->lbo", xcol, conv_w[j][s],
                             preferred_element_type=jnp.float32)
            acc = acc + conv_b[j][s]            # (1, Cout) broadcast
            Lp = Lout // pool                   # nn.MaxPool1d floor semantics
            if j < n_conv - 1:
                # Pool + ReLU along the leading (time) dim; keep (Lp, B, Cout).
                wins = []
                for t in range(Lp):
                    m = acc[t * pool]
                    for q in range(1, pool):
                        m = jnp.maximum(m, acc[t * pool + q])
                    wins.append(jnp.maximum(m, 0.0)[None])
                h = jnp.concatenate(wins, axis=0)
            else:
                # Last conv layer: fold pool + ReLU + channel-major flatten +
                # concat-over-stims directly into the first FC contraction.
                for t in range(Lp):
                    m = acc[t * pool]
                    for q in range(1, pool):
                        m = jnp.maximum(m, acc[t * pool + q])
                    m = jnp.maximum(m, 0.0)                       # (B, C_last)
                    h1 = h1 + jnp.dot(m, wf0_ref[s * Lp + t],
                                      preferred_element_type=jnp.float32)

    h2 = h1 + bf0_ref[...]
    if n_fc > 1:
        h2 = jnp.maximum(h2, 0.0)               # ReLU after first FC layer
    for i, (w_ref, b_ref) in enumerate(fc_rest):
        h2 = jnp.dot(h2, w_ref[...], preferred_element_type=jnp.float32) + b_ref[...]
        if i < len(fc_rest) - 1:
            h2 = jnp.maximum(h2, 0.0)
    o_ref[...] = h2.astype(o_ref.dtype)


# ------------------------- parameters (PyTorch layout) --------------------- #

def init_params(key, hpar):
    timeBins, inp_chan, num_stim = hpar["inputShape"]
    cb = hpar["conv_block"]
    params = {"cnn": [], "fc_w": [], "fc_b": []}
    flat_total = 0
    for _ in range(num_stim):
        layers = []
        cin, L = inp_chan, timeBins
        for cout, K, p in zip(cb["filter"], cb["kernel"], cb["pool"]):
            key, k1, k2 = jax.random.split(key, 3)
            bound = 1.0 / (cin * K) ** 0.5
            w = jax.random.uniform(k1, (cout, cin, K), jnp.float32, -bound, bound)
            b = jax.random.uniform(k2, (cout,), jnp.float32, -bound, bound)
            layers.append((w, b, p))
            L = (L - K + 1) // p
            cin = cout
        params["cnn"].append(layers)
        flat_total += cin * L
    in_dim = flat_total
    for d in list(hpar["fc_block"]["dims"]) + [hpar["outputSize"]]:
        key, k1, k2 = jax.random.split(key, 3)
        bound = 1.0 / in_dim ** 0.5
        params["fc_w"].append(
            jax.random.uniform(k1, (d, in_dim), jnp.float32, -bound, bound))
        params["fc_b"].append(
            jax.random.uniform(k2, (d,), jnp.float32, -bound, bound))
        in_dim = d
    return params, flat_total


def prepare_params(params, hpar):
    """One-time re-layout of PyTorch-convention params into kernel layout."""
    timeBins, inp_chan, num_stim = hpar["inputShape"]
    cb = hpar["conv_block"]
    n_conv = len(cb["filter"])
    conv_kp = tuple(zip(cb["kernel"], cb["pool"]))

    args = []
    for j in range(n_conv):
        ws, bs = [], []
        for s in range(num_stim):
            w, b, _p = params["cnn"][s][j]                       # (Cout, Cin, K)
            Cout, Cin, K = w.shape
            # im2col weight: row index = k*Cin + c  ->  (K*Cin, Cout)
            ws.append(jnp.transpose(w, (2, 1, 0)).reshape(K * Cin, Cout))
            bs.append(b.reshape(1, Cout))
        args.append(jnp.stack(ws, axis=0))                       # (S, K*Cin, Cout)
        args.append(jnp.stack(bs, axis=0))                       # (S, 1, Cout)

    L = timeBins
    for K, p in conv_kp:
        L = (L - K + 1) // p
    Lp_last, C_last = L, cb["filter"][-1]

    # First FC weight: fold PyTorch's channel-major flatten + cat over stims.
    # PyTorch column index = s*C*Lp + c*Lp + l  ->  kernel index [s*Lp + l][c, f]
    w0, b0 = params["fc_w"][0], params["fc_b"][0]
    F0 = w0.shape[0]
    wf0 = jnp.transpose(w0).reshape(num_stim, C_last, Lp_last, F0)
    wf0 = jnp.transpose(wf0, (0, 2, 1, 3)).reshape(num_stim * Lp_last, C_last, F0)
    args += [wf0, b0.reshape(1, F0)]

    for w, b in zip(params["fc_w"][1:], params["fc_b"][1:]):
        args += [jnp.transpose(w), b.reshape(1, -1)]

    static = dict(S=num_stim, conv_kp=conv_kp, n_fc=len(params["fc_w"]),
                  out_dim=params["fc_w"][-1].shape[0])
    args = [jax.block_until_ready(a) for a in args]              # materialize once
    return args, static


# --------------------------------- forward --------------------------------- #

def forward_pallas(x, prep_args, static):
    """x: (B, inp_chan, timeBins, stim) — same convention as MyModel.forward."""
    B = x.shape[0]
    x_s = jnp.transpose(x, (3, 2, 0, 1)).astype(jnp.float32)     # (S, T, B, Cin)
    kern = functools.partial(_fused_forward_kernel, S=static["S"],
                             conv_kp=static["conv_kp"], n_fc=static["n_fc"])
    return pl.pallas_call(
        kern,
        out_shape=jax.ShapeDtypeStruct((B, static["out_dim"]), jnp.float32),
        in_specs=[_VMEM] * (1 + len(prep_args)),
        out_specs=_VMEM,
    )(x_s, *prep_args)


def forward_ref(x, params):
    """Pure-JAX reference (lax.conv) mirroring MyModel.forward."""
    B, _, _, S = x.shape
    flats = []
    for s in range(S):
        h = x[:, :, :, s]
        for (w, b, p) in params["cnn"][s]:
            h = jax.lax.conv_general_dilated(
                h, w, window_strides=(1,), padding="VALID",
                dimension_numbers=("NCH", "OIH", "NCH")) + b[None, :, None]
            L = h.shape[-1]
            Lp = L // p
            h = h[:, :, :Lp * p].reshape(B, h.shape[1], Lp, p).max(axis=-1)
            h = jnp.maximum(h, 0.0)
        flats.append(h.reshape(B, -1))
    hcat = jnp.concatenate(flats, axis=1)
    for i, (w, b) in enumerate(zip(params["fc_w"], params["fc_b"])):
        hcat = hcat @ w.T + b
        if i < len(params["fc_w"]) - 1:
            hcat = jnp.maximum(hcat, 0.0)
    return hcat


if __name__ == "__main__":
    key = jax.random.PRNGKey(0)
    key, kx, kp = jax.random.split(key, 3)
    timeBins, inp_chan, num_stim = HPAR["inputShape"]
    B = 2
    x = jax.random.normal(kx, (B, inp_chan, timeBins, num_stim), jnp.float32)
    params, _flat_total = init_params(kp, HPAR)
    prep_args, static = prepare_params(params, HPAR)

    fwd = jax.jit(lambda xx: forward_pallas(xx, prep_args, static))
    y = jax.block_until_ready(fwd(x))

    y_ref = forward_ref(x, params)
    assert y.shape == (B, HPAR["outputSize"])
    assert jnp.allclose(y, y_ref, atol=1e-4, rtol=1e-4)
    print("KERNEL_OK")
</pallas_src>

<mosaic_0001>
module attributes {stable_mosaic.version = 11 : i64} {
  func.func @_fused_forward_kernel(%arg0: memref<2x16x2x4xf32, #tpu.memory_space<vmem>>, %arg1: memref<2x12x8xf32, #tpu.memory_space<vmem>>, %arg2: memref<2x1x8xf32, #tpu.memory_space<vmem>>, %arg3: memref<2x24x8xf32, #tpu.memory_space<vmem>>, %arg4: memref<2x1x8xf32, #tpu.memory_space<vmem>>, %arg5: memref<4x8x32xf32, #tpu.memory_space<vmem>>, %arg6: memref<1x32xf32, #tpu.memory_space<vmem>>, %arg7: memref<32x5xf32, #tpu.memory_space<vmem>>, %arg8: memref<1x5xf32, #tpu.memory_space<vmem>>, %arg9: memref<2x5xf32, #tpu.memory_space<vmem>>) attributes {dimension_semantics = [], scalar_prefetch = 0 : i64, scratch_operands = 0 : i64, tpu.core_type = #tpu.core_type<tc>} {
    %cst = arith.constant 0.000000e+00 : f32
    %0 = vector.broadcast %cst : f32 to vector<2x32xf32>
    %c0 = arith.constant 0 : index
    %c0_0 = arith.constant 0 : index
    %c0_1 = arith.constant 0 : index
    %c0_2 = arith.constant 0 : index
    %1 = vector.load %arg0[%c0, %c0_0, %c0_1, %c0_2] : memref<2x16x2x4xf32, #tpu.memory_space<vmem>>, vector<1x16x2x4xf32>
    %2 = vector.shape_cast %1 : vector<1x16x2x4xf32> to vector<16x2x4xf32>
    %3 = vector.extract_strided_slice %2 {offsets = [0, 0, 0], sizes = [14, 2, 4], strides = [1, 1, 1]} : vector<16x2x4xf32> to vector<14x2x4xf32>
    %4 = vector.extract_strided_slice %2 {offsets = [1, 0, 0], sizes = [14, 2, 4], strides = [1, 1, 1]} : vector<16x2x4xf32> to vector<14x2x4xf32>
    %5 = vector.extract_strided_slice %2 {offsets = [2, 0, 0], sizes = [14, 2, 4], strides = [1, 1, 1]} : vector<16x2x4xf32> to vector<14x2x4xf32>
    %6 = tpu.concatenate %3, %4, %5 in 2 : vector<14x2x4xf32>, vector<14x2x4xf32>, vector<14x2x4xf32> -> vector<14x2x12xf32>
    %c0_3 = arith.constant 0 : index
    %c0_4 = arith.constant 0 : index
    %c0_5 = arith.constant 0 : index
    %7 = vector.load %arg1[%c0_3, %c0_4, %c0_5] : memref<2x12x8xf32, #tpu.memory_space<vmem>>, vector<1x12x8xf32>
    %8 = vector.shape_cast %7 : vector<1x12x8xf32> to vector<12x8xf32>
    "tpu.trace_start"() <{level = 10 : i32, message = "lbf,fo->lbo"}> : () -> ()
    %cst_6 = arith.constant dense<0.000000e+00> : vector<14x2x8xf32>
    %9 = tpu.matmul %6, %8, %cst_6 {dimension_numbers = #tpu.dot_dimension_numbers<[2], [0], [0, 1], [1], [0, 0, 0, 1, 1, 1], [], []>} : vector<14x2x12xf32>, vector<12x8xf32>, vector<14x2x8xf32> -> vector<14x2x8xf32>
    "tpu.trace_stop"() : () -> ()
    %c0_7 = arith.constant 0 : index
    %c0_8 = arith.constant 0 : index
    %c0_9 = arith.constant 0 : index
    %10 = vector.load %arg2[%c0_7, %c0_8, %c0_9] : memref<2x1x8xf32, #tpu.memory_space<vmem>>, vector<1x1x8xf32>
    %11 = vector.shape_cast %10 : vector<1x1x8xf32> to vector<1x8xf32>
    %12 = vector.shape_cast %11 : vector<1x8xf32> to vector<1x1x8xf32>
    %13 = vector.broadcast %12 : vector<1x1x8xf32> to vector<14x2x8xf32>
    %14 = arith.addf %9, %13 : vector<14x2x8xf32>
    %15 = vector.extract_strided_slice %14 {offsets = [0, 0, 0], sizes = [1, 2, 8], strides = [1, 1, 1]} : vector<14x2x8xf32> to vector<1x2x8xf32>
    %16 = vector.shape_cast %15 : vector<1x2x8xf32> to vector<2x8xf32>
    %17 = vector.extract_strided_slice %14 {offsets = [1, 0, 0], sizes = [1, 2, 8], strides = [1, 1, 1]} : vector<14x2x8xf32> to vector<1x2x8xf32>
    %18 = vector.shape_cast %17 : vector<1x2x8xf32> to vector<2x8xf32>
    %19 = arith.maximumf %16, %18 : vector<2x8xf32>
    %cst_10 = arith.constant 0.000000e+00 : f32
    %20 = vector.broadcast %cst_10 : f32 to vector<2x8xf32>
    %21 = arith.maximumf %19, %20 : vector<2x8xf32>
    %22 = vector.shape_cast %21 : vector<2x8xf32> to vector<1x2x8xf32>
    %23 = vector.extract_strided_slice %14 {offsets = [2, 0, 0], sizes = [1, 2, 8], strides = [1, 1, 1]} : vector<14x2x8xf32> to vector<1x2x8xf32>
    %24 = vector.shape_cast %23 : vector<1x2x8xf32> to vector<2x8xf32>
    %25 = vector.extract_strided_slice %14 {offsets = [3, 0, 0], sizes = [1, 2, 8], strides = [1, 1, 1]} : vector<14x2x8xf32> to vector<1x2x8xf32>
    %26 = vector.shape_cast %25 : vector<1x2x8xf32> to vector<2x8xf32>
    %27 = arith.maximumf %24, %26 : vector<2x8xf32>
    %cst_11 = arith.constant 0.000000e+00 : f32
    %28 = vector.broadcast %cst_11 : f32 to vector<2x8xf32>
    %29 = arith.maximumf %27, %28 : vector<2x8xf32>
    %30 = vector.shape_cast %29 : vector<2x8xf32> to vector<1x2x8xf32>
    %31 = vector.extract_strided_slice %14 {offsets = [4, 0, 0], sizes = [1, 2, 8], strides = [1, 1, 1]} : vector<14x2x8xf32> to vector<1x2x8xf32>
    %32 = vector.shape_cast %31 : vector<1x2x8xf32> to vector<2x8xf32>
    %33 = vector.extract_strided_slice %14 {offsets = [5, 0, 0], sizes = [1, 2, 8], strides = [1, 1, 1]} : vector<14x2x8xf32> to vector<1x2x8xf32>
    %34 = vector.shape_cast %33 : vector<1x2x8xf32> to vector<2x8xf32>
    %35 = arith.maximumf %32, %34 : vector<2x8xf32>
    %cst_12 = arith.constant 0.000000e+00 : f32
    %36 = vector.broadcast %cst_12 : f32 to vector<2x8xf32>
    %37 = arith.maximumf %35, %36 : vector<2x8xf32>
    %38 = vector.shape_cast %37 : vector<2x8xf32> to vector<1x2x8xf32>
    %39 = vector.extract_strided_slice %14 {offsets = [6, 0, 0], sizes = [1, 2, 8], strides = [1, 1, 1]} : vector<14x2x8xf32> to vector<1x2x8xf32>
    %40 = vector.shape_cast %39 : vector<1x2x8xf32> to vector<2x8xf32>
    %41 = vector.extract_strided_slice %14 {offsets = [7, 0, 0], sizes = [1, 2, 8], strides = [1, 1, 1]} : vector<14x2x8xf32> to vector<1x2x8xf32>
    %42 = vector.shape_cast %41 : vector<1x2x8xf32> to vector<2x8xf32>
    %43 = arith.maximumf %40, %42 : vector<2x8xf32>
    %cst_13 = arith.constant 0.000000e+00 : f32
    %44 = vector.broadcast %cst_13 : f32 to vector<2x8xf32>
    %45 = arith.maximumf %43, %44 : vector<2x8xf32>
    %46 = vector.shape_cast %45 : vector<2x8xf32> to vector<1x2x8xf32>
    %47 = vector.extract_strided_slice %14 {offsets = [8, 0, 0], sizes = [1, 2, 8], strides = [1, 1, 1]} : vector<14x2x8xf32> to vector<1x2x8xf32>
    %48 = vector.shape_cast %47 : vector<1x2x8xf32> to vector<2x8xf32>
    %49 = vector.extract_strided_slice %14 {offsets = [9, 0, 0], sizes = [1, 2, 8], strides = [1, 1, 1]} : vector<14x2x8xf32> to vector<1x2x8xf32>
    %50 = vector.shape_cast %49 : vector<1x2x8xf32> to vector<2x8xf32>
    %51 = arith.maximumf %48, %50 : vector<2x8xf32>
    %cst_14 = arith.constant 0.000000e+00 : f32
    %52 = vector.broadcast %cst_14 : f32 to vector<2x8xf32>
    %53 = arith.maximumf %51, %52 : vector<2x8xf32>
    %54 = vector.shape_cast %53 : vector<2x8xf32> to vector<1x2x8xf32>
    %55 = vector.extract_strided_slice %14 {offsets = [10, 0, 0], sizes = [1, 2, 8], strides = [1, 1, 1]} : vector<14x2x8xf32> to vector<1x2x8xf32>
    %56 = vector.shape_cast %55 : vector<1x2x8xf32> to vector<2x8xf32>
    %57 = vector.extract_strided_slice %14 {offsets = [11, 0, 0], sizes = [1, 2, 8], strides = [1, 1, 1]} : vector<14x2x8xf32> to vector<1x2x8xf32>
    %58 = vector.shape_cast %57 : vector<1x2x8xf32> to vector<2x8xf32>
    %59 = arith.maximumf %56, %58 : vector<2x8xf32>
    %cst_15 = arith.constant 0.000000e+00 : f32
    %60 = vector.broadcast %cst_15 : f32 to vector<2x8xf32>
    %61 = arith.maximumf %59, %60 : vector<2x8xf32>
    %62 = vector.shape_cast %61 : vector<2x8xf32> to vector<1x2x8xf32>
    %63 = vector.extract_strided_slice %14 {offsets = [12, 0, 0], sizes = [1, 2, 8], strides = [1, 1, 1]} : vector<14x2x8xf32> to vector<1x2x8xf32>
    %64 = vector.shape_cast %63 : vector<1x2x8xf32> to vector<2x8xf32>
    %65 = vector.extract_strided_slice %14 {offsets = [13, 0, 0], sizes = [1, 2, 8], strides = [1, 1, 1]} : vector<14x2x8xf32> to vector<1x2x8xf32>
    %66 = vector.shape_cast %65 : vector<1x2x8xf32> to vector<2x8xf32>
    %67 = arith.maximumf %64, %66 : vector<2x8xf32>
    %cst_16 = arith.constant 0.000000e+00 : f32
    %68 = vector.broadcast %cst_16 : f32 to vector<2x8xf32>
    %69 = arith.maximumf %67, %68 : vector<2x8xf32>
    %70 = vector.shape_cast %69 : vector<2x8xf32> to vector<1x2x8xf32>
    %71 = tpu.concatenate %22, %30, %38, %46, %54, %62, %70 in 0 : vector<1x2x8xf32>, vector<1x2x8xf32>, vector<1x2x8xf32>, vector<1x2x8xf32>, vector<1x2x8xf32>, vector<1x2x8xf32>, vector<1x2x8xf32> -> vector<7x2x8xf32>
    %72 = vector.extract_strided_slice %71 {offsets = [0, 0, 0], sizes = [5, 2, 8], strides = [1, 1, 1]} : vector<7x2x8xf32> to vector<5x2x8xf32>
    %73 = vector.extract_strided_slice %71 {offsets = [1, 0, 0], sizes = [5, 2, 8], strides = [1, 1, 1]} : vector<7x2x8xf32> to vector<5x2x8xf32>
    %74 = vector.extract_strided_slice %71 {offsets = [2, 0, 0], sizes = [5, 2, 8], strides = [1, 1, 1]} : vector<7x2x8xf32> to vector<5x2x8xf32>
    %75 = tpu.concatenate %72, %73, %74 in 2 : vector<5x2x8xf32>, vector<5x2x8xf32>, vector<5x2x8xf32> -> vector<5x2x24xf32>
    %c0_17 = arith.constant 0 : index
    %c0_18 = arith.constant 0 : index
    %c0_19 = arith.constant 0 : index
    %76 = vector.load %arg3[%c0_17, %c0_18, %c0_19] : memref<2x24x8xf32, #tpu.memory_space<vmem>>, vector<1x24x8xf32>
    %77 = vector.shape_cast %76 : vector<1x24x8xf32> to vector<24x8xf32>
    "tpu.trace_start"() <{level = 10 : i32, message = "lbf,fo->lbo"}> : () -> ()
    %cst_20 = arith.constant dense<0.000000e+00> : vector<5x2x8xf32>
    %78 = tpu.matmul %75, %77, %cst_20 {dimension_numbers = #tpu.dot_dimension_numbers<[2], [0], [0, 1], [1], [0, 0, 0, 1, 1, 1], [], []>} : vector<5x2x24xf32>, vector<24x8xf32>, vector<5x2x8xf32> -> vector<5x2x8xf32>
    "tpu.trace_stop"() : () -> ()
    %c0_21 = arith.constant 0 : index
    %c0_22 = arith.constant 0 : index
    %c0_23 = arith.constant 0 : index
    %79 = vector.load %arg4[%c0_21, %c0_22, %c0_23] : memref<2x1x8xf32, #tpu.memory_space<vmem>>, vector<1x1x8xf32>
    %80 = vector.shape_cast %79 : vector<1x1x8xf32> to vector<1x8xf32>
    %81 = vector.shape_cast %80 : vector<1x8xf32> to vector<1x1x8xf32>
    %82 = vector.broadcast %81 : vector<1x1x8xf32> to vector<5x2x8xf32>
    %83 = arith.addf %78, %82 : vector<5x2x8xf32>
    %84 = vector.extract_strided_slice %83 {offsets = [0, 0, 0], sizes = [1, 2, 8], strides = [1, 1, 1]} : vector<5x2x8xf32> to vector<1x2x8xf32>
    %85 = vector.shape_cast %84 : vector<1x2x8xf32> to vector<2x8xf32>
    %86 = vector.extract_strided_slice %83 {offsets = [1, 0, 0], sizes = [1, 2, 8], strides = [1, 1, 1]} : vector<5x2x8xf32> to vector<1x2x8xf32>
    %87 = vector.shape_cast %86 : vector<1x2x8xf32> to vector<2x8xf32>
    %88 = arith.maximumf %85, %87 : vector<2x8xf32>
    %cst_24 = arith.constant 0.000000e+00 : f32
    %89 = vector.broadcast %cst_24 : f32 to vector<2x8xf32>
    %90 = arith.maximumf %88, %89 : vector<2x8xf32>
    %c0_25 = arith.constant 0 : index
    %c0_26 = arith.constant 0 : index
    %c0_27 = arith.constant 0 : index
    %91 = vector.load %arg5[%c0_25, %c0_26, %c0_27] : memref<4x8x32xf32, #tpu.memory_space<vmem>>, vector<1x8x32xf32>
    %92 = vector.shape_cast %91 : vector<1x8x32xf32> to vector<8x32xf32>
    %cst_28 = arith.constant dense<0.000000e+00> : vector<2x32xf32>
    %93 = tpu.matmul %90, %92, %cst_28 {dimension_numbers = #tpu.dot_dimension_numbers<[1], [0], [0], [1], [0, 0, 1, 1], [], []>} : vector<2x8xf32>, vector<8x32xf32>, vector<2x32xf32> -> vector<2x32xf32>
    %94 = arith.addf %0, %93 : vector<2x32xf32>
    %95 = vector.extract_strided_slice %83 {offsets = [2, 0, 0], sizes = [1, 2, 8], strides = [1, 1, 1]} : vector<5x2x8xf32> to vector<1x2x8xf32>
    %96 = vector.shape_cast %95 : vector<1x2x8xf32> to vector<2x8xf32>
    %97 = vector.extract_strided_slice %83 {offsets = [3, 0, 0], sizes = [1, 2, 8], strides = [1, 1, 1]} : vector<5x2x8xf32> to vector<1x2x8xf32>
    %98 = vector.shape_cast %97 : vector<1x2x8xf32> to vector<2x8xf32>
    %99 = arith.maximumf %96, %98 : vector<2x8xf32>
    %cst_29 = arith.constant 0.000000e+00 : f32
    %100 = vector.broadcast %cst_29 : f32 to vector<2x8xf32>
    %101 = arith.maximumf %99, %100 : vector<2x8xf32>
    %c1 = arith.constant 1 : index
    %c0_30 = arith.constant 0 : index
    %c0_31 = arith.constant 0 : index
    %102 = vector.load %arg5[%c1, %c0_30, %c0_31] : memref<4x8x32xf32, #tpu.memory_space<vmem>>, vector<1x8x32xf32>
    %103 = vector.shape_cast %102 : vector<1x8x32xf32> to vector<8x32xf32>
    %cst_32 = arith.constant dense<0.000000e+00> : vector<2x32xf32>
    %104 = tpu.matmul %101, %103, %cst_32 {dimension_numbers = #tpu.dot_dimension_numbers<[1], [0], [0], [1], [0, 0, 1, 1], [], []>} : vector<2x8xf32>, vector<8x32xf32>, vector<2x32xf32> -> vector<2x32xf32>
    %105 = arith.addf %94, %104 : vector<2x32xf32>
    %c1_33 = arith.constant 1 : index
    %c0_34 = arith.constant 0 : index
    %c0_35 = arith.constant 0 : index
    %c0_36 = arith.constant 0 : index
    %106 = vector.load %arg0[%c1_33, %c0_34, %c0_35, %c0_36] : memref<2x16x2x4xf32, #tpu.memory_space<vmem>>, vector<1x16x2x4xf32>
    %107 = vector.shape_cast %106 : vector<1x16x2x4xf32> to vector<16x2x4xf32>
    %108 = vector.extract_strided_slice %107 {offsets = [0, 0, 0], sizes = [14, 2, 4], strides = [1, 1, 1]} : vector<16x2x4xf32> to vector<14x2x4xf32>
    %109 = vector.extract_strided_slice %107 {offsets = [1, 0, 0], sizes = [14, 2, 4], strides = [1, 1, 1]} : vector<16x2x4xf32> to vector<14x2x4xf32>
    %110 = vector.extract_strided_slice %107 {offsets = [2, 0, 0], sizes = [14, 2, 4], strides = [1, 1, 1]} : vector<16x2x4xf32> to vector<14x2x4xf32>
    %111 = tpu.concatenate %108, %109, %110 in 2 : vector<14x2x4xf32>, vector<14x2x4xf32>, vector<14x2x4xf32> -> vector<14x2x12xf32>
    %c1_37 = arith.constant 1 : index
    %c0_38 = arith.constant 0 : index
    %c0_39 = arith.constant 0 : index
    %112 = vector.load %arg1[%c1_37, %c0_38, %c0_39] : memref<2x12x8xf32, #tpu.memory_space<vmem>>, vector<1x12x8xf32>
    %113 = vector.shape_cast %112 : vector<1x12x8xf32> to vector<12x8xf32>
    "tpu.trace_start"() <{level = 10 : i32, message = "lbf,fo->lbo"}> : () -> ()
    %cst_40 = arith.constant dense<0.000000e+00> : vector<14x2x8xf32>
    %114 = tpu.matmul %111, %113, %cst_40 {dimension_numbers = #tpu.dot_dimension_numbers<[2], [0], [0, 1], [1], [0, 0, 0, 1, 1, 1], [], []>} : vector<14x2x12xf32>, vector<12x8xf32>, vector<14x2x8xf32> -> vector<14x2x8xf32>
    "tpu.trace_stop"() : () -> ()
    %c1_41 = arith.constant 1 : index
    %c0_42 = arith.constant 0 : index
    %c0_43 = arith.constant 0 : index
    %115 = vector.load %arg2[%c1_41, %c0_42, %c0_43] : memref<2x1x8xf32, #tpu.memory_space<vmem>>, vector<1x1x8xf32>
    %116 = vector.shape_cast %115 : vector<1x1x8xf32> to vector<1x8xf32>
    %117 = vector.shape_cast %116 : vector<1x8xf32> to vector<1x1x8xf32>
    %118 = vector.broadcast %117 : vector<1x1x8xf32> to vector<14x2x8xf32>
    %119 = arith.addf %114, %118 : vector<14x2x8xf32>
    %120 = vector.extract_strided_slice %119 {offsets = [0, 0, 0], sizes = [1, 2, 8], strides = [1, 1, 1]} : vector<14x2x8xf32> to vector<1x2x8xf32>
    %121 = vector.shape_cast %120 : vector<1x2x8xf32> to vector<2x8xf32>
    %122 = vector.extract_strided_slice %119 {offsets = [1, 0, 0], sizes = [1, 2, 8], strides = [1, 1, 1]} : vector<14x2x8xf32> to vector<1x2x8xf32>
    %123 = vector.shape_cast %122 : vector<1x2x8xf32> to vector<2x8xf32>
    %124 = arith.maximumf %121, %123 : vector<2x8xf32>
    %cst_44 = arith.constant 0.000000e+00 : f32
    %125 = vector.broadcast %cst_44 : f32 to vector<2x8xf32>
    %126 = arith.maximumf %124, %125 : vector<2x8xf32>
    %127 = vector.shape_cast %126 : vector<2x8xf32> to vector<1x2x8xf32>
    %128 = vector.extract_strided_slice %119 {offsets = [2, 0, 0], sizes = [1, 2, 8], strides = [1, 1, 1]} : vector<14x2x8xf32> to vector<1x2x8xf32>
    %129 = vector.shape_cast %128 : vector<1x2x8xf32> to vector<2x8xf32>
    %130 = vector.extract_strided_slice %119 {offsets = [3, 0, 0], sizes = [1, 2, 8], strides = [1, 1, 1]} : vector<14x2x8xf32> to vector<1x2x8xf32>
    %131 = vector.shape_cast %130 : vector<1x2x8xf32> to vector<2x8xf32>
    %132 = arith.maximumf %129, %131 : vector<2x8xf32>
    %cst_45 = arith.constant 0.000000e+00 : f32
    %133 = vector.broadcast %cst_45 : f32 to vector<2x8xf32>
    %134 = arith.maximumf %132, %133 : vector<2x8xf32>
    %135 = vector.shape_cast %134 : vector<2x8xf32> to vector<1x2x8xf32>
    %136 = vector.extract_strided_slice %119 {offsets = [4, 0, 0], sizes = [1, 2, 8], strides = [1, 1, 1]} : vector<14x2x8xf32> to vector<1x2x8xf32>
    %137 = vector.shape_cast %136 : vector<1x2x8xf32> to vector<2x8xf32>
    %138 = vector.extract_strided_slice %119 {offsets = [5, 0, 0], sizes = [1, 2, 8], strides = [1, 1, 1]} : vector<14x2x8xf32> to vector<1x2x8xf32>
    %139 = vector.shape_cast %138 : vector<1x2x8xf32> to vector<2x8xf32>
    %140 = arith.maximumf %137, %139 : vector<2x8xf32>
    %cst_46 = arith.constant 0.000000e+00 : f32
    %141 = vector.broadcast %cst_46 : f32 to vector<2x8xf32>
    %142 = arith.maximumf %140, %141 : vector<2x8xf32>
    %143 = vector.shape_cast %142 : vector<2x8xf32> to vector<1x2x8xf32>
    %144 = vector.extract_strided_slice %119 {offsets = [6, 0, 0], sizes = [1, 2, 8], strides = [1, 1, 1]} : vector<14x2x8xf32> to vector<1x2x8xf32>
    %145 = vector.shape_cast %144 : vector<1x2x8xf32> to vector<2x8xf32>
    %146 = vector.extract_strided_slice %119 {offsets = [7, 0, 0], sizes = [1, 2, 8], strides = [1, 1, 1]} : vector<14x2x8xf32> to vector<1x2x8xf32>
    %147 = vector.shape_cast %146 : vector<1x2x8xf32> to vector<2x8xf32>
    %148 = arith.maximumf %145, %147 : vector<2x8xf32>
    %cst_47 = arith.constant 0.000000e+00 : f32
    %149 = vector.broadcast %cst_47 : f32 to vector<2x8xf32>
    %150 = arith.maximumf %148, %149 : vector<2x8xf32>
    %151 = vector.shape_cast %150 : vector<2x8xf32> to vector<1x2x8xf32>
    %152 = vector.extract_strided_slice %119 {offsets = [8, 0, 0], sizes = [1, 2, 8], strides = [1, 1, 1]} : vector<14x2x8xf32> to vector<1x2x8xf32>
    %153 = vector.shape_cast %152 : vector<1x2x8xf32> to vector<2x8xf32>
    %154 = vector.extract_strided_slice %119 {offsets = [9, 0, 0], sizes = [1, 2, 8], strides = [1, 1, 1]} : vector<14x2x8xf32> to vector<1x2x8xf32>
    %155 = vector.shape_cast %154 : vector<1x2x8xf32> to vector<2x8xf32>
    %156 = arith.maximumf %153, %155 : vector<2x8xf32>
    %cst_48 = arith.constant 0.000000e+00 : f32
    %157 = vector.broadcast %cst_48 : f32 to vector<2x8xf32>
    %158 = arith.maximumf %156, %157 : vector<2x8xf32>
    %159 = vector.shape_cast %158 : vector<2x8xf32> to vector<1x2x8xf32>
    %160 = vector.extract_strided_slice %119 {offsets = [10, 0, 0], sizes = [1, 2, 8], strides = [1, 1, 1]} : vector<14x2x8xf32> to vector<1x2x8xf32>
    %161 = vector.shape_cast %160 : vector<1x2x8xf32> to vector<2x8xf32>
    %162 = vector.extract_strided_slice %119 {offsets = [11, 0, 0], sizes = [1, 2, 8], strides = [1, 1, 1]} : vector<14x2x8xf32> to vector<1x2x8xf32>
    %163 = vector.shape_cast %162 : vector<1x2x8xf32> to vector<2x8xf32>
    %164 = arith.maximumf %161, %163 : vector<2x8xf32>
    %cst_49 = arith.constant 0.000000e+00 : f32
    %165 = vector.broadcast %cst_49 : f32 to vector<2x8xf32>
    %166 = arith.maximumf %164, %165 : vector<2x8xf32>
    %167 = vector.shape_cast %166 : vector<2x8xf32> to vector<1x2x8xf32>
    %168 = vector.extract_strided_slice %119 {offsets = [12, 0, 0], sizes = [1, 2, 8], strides = [1, 1, 1]} : vector<14x2x8xf32> to vector<1x2x8xf32>
    %169 = vector.shape_cast %168 : vector<1x2x8xf32> to vector<2x8xf32>
    %170 = vector.extract_strided_slice %119 {offsets = [13, 0, 0], sizes = [1, 2, 8], strides = [1, 1, 1]} : vector<14x2x8xf32> to vector<1x2x8xf32>
    %171 = vector.shape_cast %170 : vector<1x2x8xf32> to vector<2x8xf32>
    %172 = arith.maximumf %169, %171 : vector<2x8xf32>
    %cst_50 = arith.constant 0.000000e+00 : f32
    %173 = vector.broadcast %cst_50 : f32 to vector<2x8xf32>
    %174 = arith.maximumf %172, %173 : vector<2x8xf32>
    %175 = vector.shape_cast %174 : vector<2x8xf32> to vector<1x2x8xf32>
    %176 = tpu.concatenate %127, %135, %143, %151, %159, %167, %175 in 0 : vector<1x2x8xf32>, vector<1x2x8xf32>, vector<1x2x8xf32>, vector<1x2x8xf32>, vector<1x2x8xf32>, vector<1x2x8xf32>, vector<1x2x8xf32> -> vector<7x2x8xf32>
    %177 = vector.extract_strided_slice %176 {offsets = [0, 0, 0], sizes = [5, 2, 8], strides = [1, 1, 1]} : vector<7x2x8xf32> to vector<5x2x8xf32>
    %178 = vector.extract_strided_slice %176 {offsets = [1, 0, 0], sizes = [5, 2, 8], strides = [1, 1, 1]} : vector<7x2x8xf32> to vector<5x2x8xf32>
    %179 = vector.extract_strided_slice %176 {offsets = [2, 0, 0], sizes = [5, 2, 8], strides = [1, 1, 1]} : vector<7x2x8xf32> to vector<5x2x8xf32>
    %180 = tpu.concatenate %177, %178, %179 in 2 : vector<5x2x8xf32>, vector<5x2x8xf32>, vector<5x2x8xf32> -> vector<5x2x24xf32>
    %c1_51 = arith.constant 1 : index
    %c0_52 = arith.constant 0 : index
    %c0_53 = arith.constant 0 : index
    %181 = vector.load %arg3[%c1_51, %c0_52, %c0_53] : memref<2x24x8xf32, #tpu.memory_space<vmem>>, vector<1x24x8xf32>
    %182 = vector.shape_cast %181 : vector<1x24x8xf32> to vector<24x8xf32>
    "tpu.trace_start"() <{level = 10 : i32, message = "lbf,fo->lbo"}> : () -> ()
    %cst_54 = arith.constant dense<0.000000e+00> : vector<5x2x8xf32>
    %183 = tpu.matmul %180, %182, %cst_54 {dimension_numbers = #tpu.dot_dimension_numbers<[2], [0], [0, 1], [1], [0, 0, 0, 1, 1, 1], [], []>} : vector<5x2x24xf32>, vector<24x8xf32>, vector<5x2x8xf32> -> vector<5x2x8xf32>
    "tpu.trace_stop"() : () -> ()
    %c1_55 = arith.constant 1 : index
    %c0_56 = arith.constant 0 : index
    %c0_57 = arith.constant 0 : index
    %184 = vector.load %arg4[%c1_55, %c0_56, %c0_57] : memref<2x1x8xf32, #tpu.memory_space<vmem>>, vector<1x1x8xf32>
    %185 = vector.shape_cast %184 : vector<1x1x8xf32> to vector<1x8xf32>
    %186 = vector.shape_cast %185 : vector<1x8xf32> to vector<1x1x8xf32>
    %187 = vector.broadcast %186 : vector<1x1x8xf32> to vector<5x2x8xf32>
    %188 = arith.addf %183, %187 : vector<5x2x8xf32>
    %189 = vector.extract_strided_slice %188 {offsets = [0, 0, 0], sizes = [1, 2, 8], strides = [1, 1, 1]} : vector<5x2x8xf32> to vector<1x2x8xf32>
    %190 = vector.shape_cast %189 : vector<1x2x8xf32> to vector<2x8xf32>
    %191 = vector.extract_strided_slice %188 {offsets = [1, 0, 0], sizes = [1, 2, 8], strides = [1, 1, 1]} : vector<5x2x8xf32> to vector<1x2x8xf32>
    %192 = vector.shape_cast %191 : vector<1x2x8xf32> to vector<2x8xf32>
    %193 = arith.maximumf %190, %192 : vector<2x8xf32>
    %cst_58 = arith.constant 0.000000e+00 : f32
    %194 = vector.broadcast %cst_58 : f32 to vector<2x8xf32>
    %195 = arith.maximumf %193, %194 : vector<2x8xf32>
    %c2 = arith.constant 2 : index
    %c0_59 = arith.constant 0 : index
    %c0_60 = arith.constant 0 : index
    %196 = vector.load %arg5[%c2, %c0_59, %c0_60] : memref<4x8x32xf32, #tpu.memory_space<vmem>>, vector<1x8x32xf32>
    %197 = vector.shape_cast %196 : vector<1x8x32xf32> to vector<8x32xf32>
    %cst_61 = arith.constant dense<0.000000e+00> : vector<2x32xf32>
    %198 = tpu.matmul %195, %197, %cst_61 {dimension_numbers = #tpu.dot_dimension_numbers<[1], [0], [0], [1], [0, 0, 1, 1], [], []>} : vector<2x8xf32>, vector<8x32xf32>, vector<2x32xf32> -> vector<2x32xf32>
    %199 = arith.addf %105, %198 : vector<2x32xf32>
    %200 = vector.extract_strided_slice %188 {offsets = [2, 0, 0], sizes = [1, 2, 8], strides = [1, 1, 1]} : vector<5x2x8xf32> to vector<1x2x8xf32>
    %201 = vector.shape_cast %200 : vector<1x2x8xf32> to vector<2x8xf32>
    %202 = vector.extract_strided_slice %188 {offsets = [3, 0, 0], sizes = [1, 2, 8], strides = [1, 1, 1]} : vector<5x2x8xf32> to vector<1x2x8xf32>
    %203 = vector.shape_cast %202 : vector<1x2x8xf32> to vector<2x8xf32>
    %204 = arith.maximumf %201, %203 : vector<2x8xf32>
    %cst_62 = arith.constant 0.000000e+00 : f32
    %205 = vector.broadcast %cst_62 : f32 to vector<2x8xf32>
    %206 = arith.maximumf %204, %205 : vector<2x8xf32>
    %c3 = arith.constant 3 : index
    %c0_63 = arith.constant 0 : index
    %c0_64 = arith.constant 0 : index
    %207 = vector.load %arg5[%c3, %c0_63, %c0_64] : memref<4x8x32xf32, #tpu.memory_space<vmem>>, vector<1x8x32xf32>
    %208 = vector.shape_cast %207 : vector<1x8x32xf32> to vector<8x32xf32>
    %cst_65 = arith.constant dense<0.000000e+00> : vector<2x32xf32>
    %209 = tpu.matmul %206, %208, %cst_65 {dimension_numbers = #tpu.dot_dimension_numbers<[1], [0], [0], [1], [0, 0, 1, 1], [], []>} : vector<2x8xf32>, vector<8x32xf32>, vector<2x32xf32> -> vector<2x32xf32>
    %210 = arith.addf %199, %209 : vector<2x32xf32>
    %c0_66 = arith.constant 0 : index
    %c0_67 = arith.constant 0 : index
    %211 = vector.load %arg6[%c0_66, %c0_67] : memref<1x32xf32, #tpu.memory_space<vmem>>, vector<1x32xf32>
    %212 = vector.broadcast %211 : vector<1x32xf32> to vector<2x32xf32>
    %213 = arith.addf %210, %212 : vector<2x32xf32>
    %cst_68 = arith.constant 0.000000e+00 : f32
    %214 = vector.broadcast %cst_68 : f32 to vector<2x32xf32>
    %215 = arith.maximumf %213, %214 : vector<2x32xf32>
    %c0_69 = arith.constant 0 : index
    %c0_70 = arith.constant 0 : index
    %216 = vector.load %arg7[%c0_69, %c0_70] : memref<32x5xf32, #tpu.memory_space<vmem>>, vector<32x5xf32>
    %cst_71 = arith.constant dense<0.000000e+00> : vector<2x5xf32>
    %217 = tpu.matmul %215, %216, %cst_71 {dimension_numbers = #tpu.dot_dimension_numbers<[1], [0], [0], [1], [0, 0, 1, 1], [], []>} : vector<2x32xf32>, vector<32x5xf32>, vector<2x5xf32> -> vector<2x5xf32>
    %c0_72 = arith.constant 0 : index
    %c0_73 = arith.constant 0 : index
    %218 = vector.load %arg8[%c0_72, %c0_73] : memref<1x5xf32, #tpu.memory_space<vmem>>, vector<1x5xf32>
    %219 = vector.broadcast %218 : vector<1x5xf32> to vector<2x5xf32>
    %220 = arith.addf %217, %219 : vector<2x5xf32>
    %c0_74 = arith.constant 0 : index
    %c0_75 = arith.constant 0 : index
    %221 = vector.load %arg9[%c0_74, %c0_75] : memref<2x5xf32, #tpu.memory_space<vmem>>, vector<2x5xf32>
    tpu.vector_store %arg9[%c0_74, %c0_75], %220 {strides = array<i32>} : memref<2x5xf32, #tpu.memory_space<vmem>>, vector<2x5xf32>,
    return
  }
}

</mosaic_0001>

<llo_original>
// kernel: _lambda_.1
$region0: #{_lambda_.1}
  #allocation0 [shape = 'u32[]', space=smem, size = 0x4, offset = 0x4, fixed_abs, tag = 'smem constant byte address 0x4 - core index']
  #allocation1 [shape = 'u32[144,128]{1,0:T(1,128)}', space=vmem, size = 0x12000, scoped, tag = 'internal scratch']
  %s0 = inlined_call_operand.vmem [shape: f32[2,16,2,4], index: 0, kind: input, shape index: {}]
  %s1 = inlined_call_operand.hbm [shape: f32[2,12,8], index: 1, kind: input, shape index: {}]
  %s2 = inlined_call_operand.vmem [shape: f32[2,1,8], index: 2, kind: input, shape index: {}]
  %s3 = inlined_call_operand.vmem [shape: f32[2,24,8], index: 3, kind: input, shape index: {}]
  %s4 = inlined_call_operand.vmem [shape: f32[2,1,8], index: 4, kind: input, shape index: {}]
  %s5 = inlined_call_operand.hbm [shape: f32[4,8,32], index: 5, kind: input, shape index: {}]
  %s6 = inlined_call_operand.vmem [shape: f32[1,32], index: 6, kind: input, shape index: {}]
  %s7 = inlined_call_operand.vmem [shape: f32[32,5], index: 7, kind: input, shape index: {}]
  %s8 = inlined_call_operand.vmem [shape: f32[1,5], index: 8, kind: input, shape index: {}]
  %s9 = inlined_call_operand.hbm [shape: f32[2,5], index: 9, kind: output, shape index: {}]
  %s10 = sld [smem:[#allocation0]]
  $region54: #{_lambda_.1} parent=0
    _
  %s12 = ssub.s32 1, %s10
  %s13 = scalar_select 0, %s12, %s10
  $region1: #{_lambda_.1} parent=0
    #allocation2 [shape = 'u8[16384]{0}', space=vmem, size = 0x4000, scoped, tag = 'input window, operand 1, single buffered']
    #allocation3 [shape = 's32[1]{0}', space=sflag, size = 0x4, scoped, tag = 'scoped memory for _lambda_.1']
    #allocation4 [shape = 's32[1]{0}', space=sflag, size = 0x4, scoped, tag = 'scoped memory for _lambda_.1']
    #allocation5 [shape = 'u8[16384]{0}', space=vmem, size = 0x4000, scoped, tag = 'input window, operand 5, single buffered']
    #allocation6 [shape = 's32[1]{0}', space=sflag, size = 0x4, scoped, tag = 'scoped memory for _lambda_.1']
    #allocation7 [shape = 'u8[1024]{0}', space=vmem, size = 0x400, scoped, tag = 'output window, operand 0, single buffered']
    %14 = vsyncpa [#allocation3], 0
    %15 = vsyncpa [#allocation6], 0
    %16 = vsyncpa [#allocation4], 0
    // Predicated region
    $region2: #{_lambda_.1} parent=1 // pred_check
      _
    $region3: #{_lambda_.1} parent=1 // pred_check_branch
      %18 = sbr.rel (0) target = $region5
    $region4: #{_lambda_.1} parent=1 // pred_region
      _
    $region5: #{_lambda_.1} parent=1 // pred_fallthru
      _
    // Predicated region
    $region6: #{_lambda_.1} parent=1 // pred_check
      _
    $region7: #{_lambda_.1} parent=1 // pred_check_branch
      %20 = sbr.rel (0) target = $region9
    $region8: #{_lambda_.1} parent=1 // pred_region
      %s22 = ssub.s32 512, 512
      %23 = vsyncadd [#allocation3], %s22
      %s24 = sshll.u32 [#allocation2], 4
      %s25 = int_to_ptr.vmem [resolvable:$true] %s24
      %30 = dma.hbm_to_vmem [thread:$0]  %s1, 512, %s25, [#allocation3], 128, 128, 8
    $region9: #{_lambda_.1} parent=1 // pred_fallthru
      _
    // Predicated region
    $region10: #{_lambda_.1} parent=1 // pred_check
      _
    $region11: #{_lambda_.1} parent=1 // pred_check_branch
      %32 = sbr.rel (0) target = $region13
    $region12: #{_lambda_.1} parent=1 // pred_region
      _
    $region13: #{_lambda_.1} parent=1 // pred_fallthru
      _
    // Predicated region
    $region14: #{_lambda_.1} parent=1 // pred_check
      _
    $region15: #{_lambda_.1} parent=1 // pred_check_branch
      %34 = sbr.rel (0) target = $region17
    $region16: #{_lambda_.1} parent=1 // pred_region
      _
    $region17: #{_lambda_.1} parent=1 // pred_fallthru
      _
    // Predicated region
    $region18: #{_lambda_.1} parent=1 // pred_check
      _
    $region19: #{_lambda_.1} parent=1 // pred_check_branch
      %36 = sbr.rel (0) target = $region21
    $region20: #{_lambda_.1} parent=1 // pred_region
      _
    $region21: #{_lambda_.1} parent=1 // pred_fallthru
      _
    // Predicated region
    $region22: #{_lambda_.1} parent=1 // pred_check
      _
    $region23: #{_lambda_.1} parent=1 // pred_check_branch
      %38 = sbr.rel (0) target = $region25
    $region24: #{_lambda_.1} parent=1 // pred_region
      %s40 = ssub.s32 512, 512
      %41 = vsyncadd [#allocation6], %s40
      %s42 = sshll.u32 [#allocation5], 4
      %s43 = int_to_ptr.vmem [resolvable:$true] %s42
      %48 = dma.hbm_to_vmem [thread:$0]  %s5, 512, %s43, [#allocation6], 128, 128, 8
    $region25: #{_lambda_.1} parent=1 // pred_fallthru
      _
    // Predicated region
    $region26: #{_lambda_.1} parent=1 // pred_check
      _
    $region27: #{_lambda_.1} parent=1 // pred_check_branch
      %50 = sbr.rel (0) target = $region29
    $region28: #{_lambda_.1} parent=1 // pred_region
      _
    $region29: #{_lambda_.1} parent=1 // pred_fallthru
      _
    // Predicated region
    $region30: #{_lambda_.1} parent=1 // pred_check
      _
    $region31: #{_lambda_.1} parent=1 // pred_check_branch
      %52 = sbr.rel (0) target = $region33
    $region32: #{_lambda_.1} parent=1 // pred_region
      _
    $region33: #{_lambda_.1} parent=1 // pred_fallthru
      _
    // Predicated region
    $region34: #{_lambda_.1} parent=1 // pred_check
      _
    $region35: #{_lambda_.1} parent=1 // pred_check_branch
      %54 = sbr.rel (0) target = $region37
    $region36: #{_lambda_.1} parent=1 // pred_region
      _
    $region37: #{_lambda_.1} parent=1 // pred_fallthru
      _
    // Predicated region
    $region38: #{_lambda_.1} parent=1 // pred_check
      _
    $region39: #{_lambda_.1} parent=1 // pred_check_branch
      %56 = sbr.rel (0) target = $region41
    $region40: #{_lambda_.1} parent=1 // pred_region
      %57 = dma.done [#allocation3], 512
    $region41: #{_lambda_.1} parent=1 // pred_fallthru
      _
    // Predicated region
    $region42: #{_lambda_.1} parent=1 // pred_check
      _
    $region43: #{_lambda_.1} parent=1 // pred_check_branch
      %59 = sbr.rel (0) target = $region45
    $region44: #{_lambda_.1} parent=1 // pred_region
      %60 = dma.done [#allocation6], 512
    $region45: #{_lambda_.1} parent=1 // pred_fallthru
      _
    %v61 = vld [vmem:[%s0] sm:$0x3]
    %v62 = vld [vmem:[%s0 + $0x2] sm:$0x3]
    %v63 = vld [vmem:[%s0 + $0x4] sm:$0x3]
    %v64 = vld [vmem:[%s0 + $0x6] sm:$0x3]
    %v65 = vld [vmem:[%s0 + $0x8] sm:$0x3]
    %v66 = vld [vmem:[%s0 + $0xa] sm:$0x3]
    %v67 = vld [vmem:[%s0 + $0xc] sm:$0x3]
    %v68 = vld [vmem:[%s0 + $0xe] sm:$0x3]
    %v69 = vld [vmem:[%s0 + $0x10] sm:$0x3]
    %v70 = vld [vmem:[%s0 + $0x12] sm:$0x3]
    %v71 = vld [vmem:[%s0 + $0x14] sm:$0x3]
    %v72 = vld [vmem:[%s0 + $0x16] sm:$0x3]
    %v73 = vld [vmem:[%s0 + $0x18] sm:$0x3]
    %v74 = vld [vmem:[%s0 + $0x1a] sm:$0x3]
    %v75 = vld [vmem:[%s0 + $0x1c] sm:$0x3]
    %v76 = vld [vmem:[%s0 + $0x1e] sm:$0x3]
    %91 = vrot.lane.b32.xlu0 %v62, 4
    %v92 = vpop.permute.xlu0 %91
    %93 = vrot.lane.b32.xlu0 %v63, 4
    %v94 = vpop.permute.xlu0 %93
    %95 = vrot.lane.b32.xlu0 %v64, 4
    %v96 = vpop.permute.xlu0 %95
    %97 = vrot.lane.b32.xlu0 %v65, 4
    %v98 = vpop.permute.xlu0 %97
    %99 = vrot.lane.b32.xlu0 %v66, 4
    %v100 = vpop.permute.xlu0 %99
    %101 = vrot.lane.b32.xlu0 %v67, 4
    %v102 = vpop.permute.xlu0 %101
    %103 = vrot.lane.b32.xlu0 %v68, 4
    %v104 = vpop.permute.xlu0 %103
    %105 = vrot.lane.b32.xlu0 %v69, 4
    %v106 = vpop.permute.xlu0 %105
    %107 = vrot.lane.b32.xlu0 %v70, 4
    %v108 = vpop.permute.xlu0 %107
    %109 = vrot.lane.b32.xlu0 %v71, 4
    %v110 = vpop.permute.xlu0 %109
    %111 = vrot.lane.b32.xlu0 %v72, 4
    %v112 = vpop.permute.xlu0 %111
    %113 = vrot.lane.b32.xlu0 %v73, 4
    %v114 = vpop.permute.xlu0 %113
    %115 = vrot.lane.b32.xlu0 %v74, 4
    %v116 = vpop.permute.xlu0 %115
    %117 = vrot.lane.b32.xlu0 %v75, 4
    %v118 = vpop.permute.xlu0 %117
    %134 = vrot.lane.b32.xlu0 %v63, 8
    %v135 = vpop.permute.xlu0 %134
    %136 = vrot.lane.b32.xlu0 %v64, 8
    %v137 = vpop.permute.xlu0 %136
    %138 = vrot.lane.b32.xlu0 %v65, 8
    %v139 = vpop.permute.xlu0 %138
    %140 = vrot.lane.b32.xlu0 %v66, 8
    %v141 = vpop.permute.xlu0 %140
    %142 = vrot.lane.b32.xlu0 %v67, 8
    %v143 = vpop.permute.xlu0 %142
    %144 = vrot.lane.b32.xlu0 %v68, 8
    %v145 = vpop.permute.xlu0 %144
    %146 = vrot.lane.b32.xlu0 %v69, 8
    %v147 = vpop.permute.xlu0 %146
    %148 = vrot.lane.b32.xlu0 %v70, 8
    %v149 = vpop.permute.xlu0 %148
    %150 = vrot.lane.b32.xlu0 %v71, 8
    %v151 = vpop.permute.xlu0 %150
    %152 = vrot.lane.b32.xlu0 %v72, 8
    %v153 = vpop.permute.xlu0 %152
    %154 = vrot.lane.b32.xlu0 %v73, 8
    %v155 = vpop.permute.xlu0 %154
    %156 = vrot.lane.b32.xlu0 %v74, 8
    %v157 = vpop.permute.xlu0 %156
    %158 = vrot.lane.b32.xlu0 %v75, 8
    %v159 = vpop.permute.xlu0 %158
    %160 = vrot.lane.b32.xlu0 %v76, 8
    %v161 = vpop.permute.xlu0 %160
    %vm176 = vcmask 31744
    %v177 = vsel %vm176, %v61, %v92
    %v178 = vsel %vm176, %v62, %v94
    %v179 = vsel %vm176, %v63, %v96
    %v180 = vsel %vm176, %v64, %v98
    %v181 = vsel %vm176, %v65, %v100
    %v182 = vsel %vm176, %v66, %v102
    %v183 = vsel %vm176, %v67, %v104
    %v184 = vsel %vm176, %v68, %v106
    %v185 = vsel %vm176, %v69, %v108
    %v186 = vsel %vm176, %v70, %v110
    %v187 = vsel %vm176, %v71, %v112
    %v188 = vsel %vm176, %v72, %v114
    %v189 = vsel %vm176, %v73, %v116
    %v190 = vsel %vm176, %v74, %v118
    %vm191 = vcmask 64512
    %v192 = vsel %vm191, %v177, %v135
    %v193 = vsel %vm191, %v178, %v137
    %v194 = vsel %vm191, %v179, %v139
    %v195 = vsel %vm191, %v180, %v141
    %v196 = vsel %vm191, %v181, %v143
    %v197 = vsel %vm191, %v182, %v145
    %v198 = vsel %vm191, %v183, %v147
    %v199 = vsel %vm191, %v184, %v149
    %v200 = vsel %vm191, %v185, %v151
    %v201 = vsel %vm191, %v186, %v153
    %v202 = vsel %vm191, %v187, %v155
    %v203 = vsel %vm191, %v188, %v157
    %v204 = vsel %vm191, %v189, %v159
    %v205 = vsel %vm191, %v190, %v161
    %v206 = vld [vmem:[#allocation2] sm:$0xff]
    %v207 = vld [vmem:[#allocation2 + $0x8] sm:$0xf]
    %v208 = vld [vmem:[%s2] sm:$0x1]
    %v210 = vlaneseq
    %v211 = vshrl.u32 %v210, 7
    %v212 = vsub.s32 0, %v211
    %v213 = vrot.slane %v208, %v212
    %v228 = vcombine.low %v192, %v193
    %v229 = vcombine.low %v194, %v195
    %v231 = vunpack.c.l.s4 1983009808
    %v232 = vunpack.c.0.s8 %v231
    %v233 = vlaneseq
    %v234 = vshrl.u32 %v233, 7
    %v235 = vsub.s32 %v232, %v234
    %v236 = vrot.slane %v228, %v235
    %v238 = vunpack.c.l.s4 1983009808
    %v239 = vunpack.c.0.s8 %v238
    %v240 = vlaneseq
    %v241 = vshrl.u32 %v240, 7
    %v242 = vsub.s32 %v239, %v241
    %v243 = vrot.slane %v229, %v242
    %v244 = vcombine.low %v236, %v243
    %v245 = vcombine.low %v196, %v197
    %v246 = vcombine.low %v198, %v199
    %v248 = vunpack.c.l.s4 1983009808
    %v249 = vunpack.c.0.s8 %v248
    %v250 = vlaneseq
    %v251 = vshrl.u32 %v250, 7
    %v252 = vsub.s32 %v249, %v251
    %v253 = vrot.slane %v245, %v252
    %v255 = vunpack.c.l.s4 1983009808
    %v256 = vunpack.c.0.s8 %v255
    %v257 = vlaneseq
    %v258 = vshrl.u32 %v257, 7
    %v259 = vsub.s32 %v256, %v258
    %v260 = vrot.slane %v246, %v259
    %v261 = vcombine.low %v253, %v260
    %v262 = vcombine.low %v200, %v201
    %v263 = vcombine.low %v202, %v203
    %v265 = vunpack.c.l.s4 1983009808
    %v266 = vunpack.c.0.s8 %v265
    %v267 = vlaneseq
    %v268 = vshrl.u32 %v267, 7
    %v269 = vsub.s32 %v266, %v268
    %v270 = vrot.slane %v262, %v269
    %v272 = vunpack.c.l.s4 1983009808
    %v273 = vunpack.c.0.s8 %v272
    %v274 = vlaneseq
    %v275 = vshrl.u32 %v274, 7
    %v276 = vsub.s32 %v273, %v275
    %v277 = vrot.slane %v263, %v276
    %v278 = vcombine.low %v270, %v277
    %v279 = vcombine.low %v204, %v205
    %v281 = vunpack.c.l.s4 1983009808
    %v282 = vunpack.c.0.s8 %v281
    %v283 = vlaneseq
    %v284 = vshrl.u32 %v283, 7
    %v285 = vsub.s32 %v282, %v284
    %v286 = vrot.slane %v279, %v285
    %v287 = vcombine.low %v213, %v213
    %v289 = vunpack.c.l.s4 1983009808
    %v290 = vunpack.c.0.s8 %v289
    %v291 = vlaneseq
    %v292 = vshrl.u32 %v291, 7
    %v293 = vsub.s32 %v290, %v292
    %v294 = vrot.slane %v287, %v293
    %v295 = vcombine.low %v294, %v294
    %vm298 = vcmask 97280
    %v299 = vsel %vm298, %v244, 0
    %v301 = vsel %vm298, %v261, 0
    %v303 = vsel %vm298, %v278, 0
    %v305 = vsel %vm298, %v286, 0
    %vm307 = vcmask 1043456
    %v309 = vsel %vm307, %v207, 0
    %311 = vmatprep.subr.mxu0 0.0
    %312 = vmatpush1.msra.mxu0 %v206
    %313 = vmatprep.subr.mxu0 0.0
    %314 = vmatpush1.msra.mxu0 %v309
    %315 = vmatprep.subr.mxu0 0.0
    %316 = vmatpush1.msra.mxu0 0.0
    %317 = vmatprep.subr.mxu0 0.0
    %318 = vmatpush1.msra.mxu0 0.0
    %319 = vmatprep.subr.mxu0 0.0
    %320 = vmatpush1.msra.mxu0 0.0
    %321 = vmatprep.subr.mxu0 0.0
    %322 = vmatpush1.msra.mxu0 0.0
    %323 = vmatprep.subr.mxu0 0.0
    %324 = vmatpush1.msra.mxu0 0.0
    %325 = vmatprep.subr.mxu0 0.0
    %326 = vmatpush1.msra.mxu0 0.0
    %327 = vmatprep.subr.mxu0 0.0
    %328 = vmatpush1.msra.mxu0 0.0
    %329 = vmatprep.subr.mxu0 0.0
    %330 = vmatpush1.msra.mxu0 0.0
    %331 = vmatprep.subr.mxu0 0.0
    %332 = vmatpush1.msra.mxu0 0.0
    %333 = vmatprep.subr.mxu0 0.0
    %334 = vmatpush1.msra.mxu0 0.0
    %335 = vmatprep.subr.mxu0 0.0
    %336 = vmatpush1.msra.mxu0 0.0
    %337 = vmatprep.subr.mxu0 0.0
    %338 = vmatpush1.msra.mxu0 0.0
    %339 = vmatprep.subr.mxu0 0.0
    %340 = vmatpush1.msra.mxu0 0.0
    %341 = vmatprep.subr.mxu0 0.0
    %342 = vmatpush1.msra.mxu0 0.0
    %343 = vmatprep.subr.mxu0 0.0
    %344 = vmatpush1.msra.mxu0 0.0
    %345 = vmatprep.subr.mxu0 0.0
    %346 = vmatpush1.msra.mxu0 0.0
    %347 = vmatprep.subr.mxu0 0.0
    %348 = vmatpush1.msra.mxu0 0.0
    %349 = vmatprep.subr.mxu0 0.0
    %350 = vmatpush1.msra.mxu0 0.0
    %351 = vmatprep.subr.mxu0 0.0
    %352 = vmatpush1.msra.mxu0 0.0
    %353 = vmatprep.subr.mxu0 0.0
    %354 = vmatpush1.msra.mxu0 0.0
    %355 = vmatprep.subr.mxu0 0.0
    %356 = vmatpush1.msra.mxu0 0.0
    %357 = vmatprep.subr.mxu0 0.0
    %358 = vmatpush1.msra.mxu0 0.0
    %359 = vmatprep.subr.mxu0 0.0
    %360 = vmatpush1.msra.mxu0 0.0
    %361 = vmatprep.subr.mxu0 0.0
    %362 = vmatpush1.msra.mxu0 0.0
    %363 = vmatprep.subr.mxu0 0.0
    %364 = vmatpush1.msra.mxu0 0.0
    %365 = vmatprep.subr.mxu0 0.0
    %366 = vmatpush1.msra.mxu0 0.0
    %367 = vmatprep.subr.mxu0 0.0
    %368 = vmatpush1.msra.mxu0 0.0
    %369 = vmatprep.subr.mxu0 0.0
    %370 = vmatpush1.msra.mxu0 0.0
    %371 = vmatprep.subr.mxu0 0.0
    %372 = vmatpush1.msra.mxu0 0.0
    %373 = vmatprep.subr.mxu0 0.0
    %374 = vmatpush1.msra.mxu0 0.0
    %375 = vmatprep.mubr.f32.mxu0 0.0
    %376 = vmatmul.mubr.f32.gmra.mrb[0].mxu0 %v299
    %v377 = vpop.f32.mrb[0].mxu0
    %v378 = vadd.f32 %v295, %v377
    %v379 = vpop.f32.mrb[0].mxu0
    %380 = vmatprep.mubr.f32.mxu0 0.0
    %381 = vmatmul.mubr.f32.gmra.mrb[0].mxu0 %v301
    %v382 = vpop.f32.mrb[0].mxu0
    %v383 = vadd.f32 %v295, %v382
    %v384 = vpop.f32.mrb[0].mxu0
    %385 = vmatprep.mubr.f32.mxu0 0.0
    %386 = vmatmul.mubr.f32.gmra.mrb[0].mxu0 %v303
    %v387 = vpop.f32.mrb[0].mxu0
    %v388 = vadd.f32 %v295, %v387
    %v389 = vpop.f32.mrb[0].mxu0
    %390 = vmatprep.mubr.f32.mxu0 0.0
    %391 = vmatmul.mubr.f32.gmra.mrb[0].mxu0 %v305
    %v392 = vpop.f32.mrb[0].mxu0
    %v393 = vadd.f32 %v294, %v392
    %v394 = vpop.f32.mrb[0].mxu0
    %395 = vdwg.mxu0
    %v400 = vcombine.high %v378, %v378
    %v402 = vunpack.c.l.s4 1983009808
    %v403 = vunpack.c.0.s8 %v402
    %v404 = vlaneseq
    %v405 = vshrl.u32 %v404, 7
    %v406 = vsub.s32 %v403, %v405
    %v407 = vrot.slane %v378, %v406
    %v409 = vunpack.c.l.s4 1983009808
    %v410 = vunpack.c.0.s8 %v409
    %v411 = vlaneseq
    %v412 = vshrl.u32 %v411, 7
    %v413 = vsub.s32 %v410, %v412
    %v414 = vrot.slane %v400, %v413
    %v415 = vcombine.high %v407, %v407
    %v416 = vcombine.high %v414, %v414
    %v417 = vcombine.high %v383, %v383
    %v419 = vunpack.c.l.s4 1983009808
    %v420 = vunpack.c.0.s8 %v419
    %v421 = vlaneseq
    %v422 = vshrl.u32 %v421, 7
    %v423 = vsub.s32 %v420, %v422
    %v424 = vrot.slane %v383, %v423
    %v426 = vunpack.c.l.s4 1983009808
    %v427 = vunpack.c.0.s8 %v426
    %v428 = vlaneseq
    %v429 = vshrl.u32 %v428, 7
    %v430 = vsub.s32 %v427, %v429
    %v431 = vrot.slane %v417, %v430
    %v432 = vcombine.high %v424, %v424
    %v433 = vcombine.high %v431, %v431
    %v434 = vcombine.high %v388, %v388
    %v436 = vunpack.c.l.s4 1983009808
    %v437 = vunpack.c.0.s8 %v436
    %v438 = vlaneseq
    %v439 = vshrl.u32 %v438, 7
    %v440 = vsub.s32 %v437, %v439
    %v441 = vrot.slane %v388, %v440
    %v443 = vunpack.c.l.s4 1983009808
    %v444 = vunpack.c.0.s8 %v443
    %v445 = vlaneseq
    %v446 = vshrl.u32 %v445, 7
    %v447 = vsub.s32 %v444, %v446
    %v448 = vrot.slane %v434, %v447
    %v449 = vcombine.high %v441, %v441
    %v450 = vcombine.high %v448, %v448
    %v452 = vunpack.c.l.s4 1983009808
    %v453 = vunpack.c.0.s8 %v452
    %v454 = vlaneseq
    %v455 = vshrl.u32 %v454, 7
    %v456 = vsub.s32 %v453, %v455
    %v457 = vrot.slane %v393, %v456
    %v458 = vcombine.high %v457, %v457
    %v473 = vmax.f32 %v407, %v415
    %v474 = vmax.f32 %v473, 0.0
    %v475 = vmax.f32 %v414, %v416
    %v476 = vmax.f32 %v475, 0.0
    %v477 = vmax.f32 %v424, %v432
    %v478 = vmax.f32 %v477, 0.0
    %v479 = vmax.f32 %v431, %v433
    %v480 = vmax.f32 %v479, 0.0
    %v481 = vmax.f32 %v441, %v449
    %v482 = vmax.f32 %v481, 0.0
    %v483 = vmax.f32 %v448, %v450
    %v484 = vmax.f32 %v483, 0.0
    %v485 = vmax.f32 %v457, %v458
    %v486 = vmax.f32 %v485, 0.0
    %v493 = vunpack.c.l.s4 1983009808
    %v494 = vunpack.c.0.s8 %v493
    %v495 = vlaneseq
    %v496 = vshrl.u32 %v495, 7
    %v497 = vsub.s32 %v494, %v496
    %v498 = vrot.slane %v476, %v497
    %v500 = vunpack.c.l.s4 1983009808
    %v501 = vunpack.c.0.s8 %v500
    %v502 = vlaneseq
    %v503 = vshrl.u32 %v502, 7
    %v504 = vsub.s32 %v501, %v503
    %v505 = vrot.slane %v478, %v504
    %v507 = vunpack.c.l.s4 1983009808
    %v508 = vunpack.c.0.s8 %v507
    %v509 = vlaneseq
    %v510 = vshrl.u32 %v509, 7
    %v511 = vsub.s32 %v508, %v510
    %v512 = vrot.slane %v480, %v511
    %v514 = vunpack.c.l.s4 1983009808
    %v515 = vunpack.c.0.s8 %v514
    %v516 = vlaneseq
    %v517 = vshrl.u32 %v516, 7
    %v518 = vsub.s32 %v515, %v517
    %v519 = vrot.slane %v482, %v518
    %v521 = vunpack.c.l.s4 1983009808
    %v522 = vunpack.c.0.s8 %v521
    %v523 = vlaneseq
    %v524 = vshrl.u32 %v523, 7
    %v525 = vsub.s32 %v522, %v524
    %v526 = vrot.slane %v484, %v525
    %527 = vrot.lane.b32.xlu0 %v498, 8
    %v528 = vpop.permute.xlu0 %527
    %529 = vrot.lane.b32.xlu0 %v505, 8
    %v530 = vpop.permute.xlu0 %529
    %531 = vrot.lane.b32.xlu0 %v512, 8
    %v532 = vpop.permute.xlu0 %531
    %533 = vrot.lane.b32.xlu0 %v519, 8
    %v534 = vpop.permute.xlu0 %533
    %535 = vrot.lane.b32.xlu0 %v526, 8
    %v536 = vpop.permute.xlu0 %535
    %v544 = vunpack.c.l.s4 1983009808
    %v545 = vunpack.c.0.s8 %v544
    %v546 = vlaneseq
    %v547 = vshrl.u32 %v546, 7
    %v548 = vsub.s32 %v545, %v547
    %v549 = vrot.slane %v486, %v548
    %550 = vrot.lane.b32.xlu0 %v505, 16
    %v551 = vpop.permute.xlu0 %550
    %552 = vrot.lane.b32.xlu0 %v512, 16
    %v553 = vpop.permute.xlu0 %552
    %554 = vrot.lane.b32.xlu0 %v519, 16
    %v555 = vpop.permute.xlu0 %554
    %556 = vrot.lane.b32.xlu0 %v526, 16
    %v557 = vpop.permute.xlu0 %556
    %558 = vrot.lane.b32.xlu0 %v549, 16
    %v559 = vpop.permute.xlu0 %558
    %v565 = vsel %vm191, %v474, %v528
    %v566 = vsel %vm191, %v476, %v530
    %v567 = vsel %vm191, %v478, %v532
    %v568 = vsel %vm191, %v480, %v534
    %v569 = vsel %vm191, %v482, %v536
    %vm570 = vcmask 130048
    %v571 = vsel %vm570, %v565, %v551
    %v572 = vsel %vm570, %v566, %v553
    %v573 = vsel %vm570, %v567, %v555
    %v574 = vsel %vm570, %v568, %v557
    %v575 = vsel %vm570, %v569, %v559
    %v576 = vld [vmem:[%s3] sm:$0xff]
    %v577 = vld [vmem:[%s3 + $0x8] sm:$0xff]
    %v578 = vld [vmem:[%s3 + $0x10] sm:$0xff]
    %v579 = vld [vmem:[%s4] sm:$0x1]
    %v581 = vlaneseq
    %v582 = vshrl.u32 %v581, 7
    %v583 = vsub.s32 0, %v582
    %v584 = vrot.slane %v579, %v583
    %v590 = vcombine.low %v571, %v572
    %v591 = vcombine.low %v573, %v574
    %v593 = vunpack.c.l.s4 1983009808
    %v594 = vunpack.c.0.s8 %v593
    %v595 = vlaneseq
    %v596 = vshrl.u32 %v595, 7
    %v597 = vsub.s32 %v594, %v596
    %v598 = vrot.slane %v590, %v597
    %v600 = vunpack.c.l.s4 1983009808
    %v601 = vunpack.c.0.s8 %v600
    %v602 = vlaneseq
    %v603 = vshrl.u32 %v602, 7
    %v604 = vsub.s32 %v601, %v603
    %v605 = vrot.slane %v591, %v604
    %v606 = vcombine.low %v598, %v605
    %v608 = vunpack.c.l.s4 1983009808
    %v609 = vunpack.c.0.s8 %v608
    %v610 = vlaneseq
    %v611 = vshrl.u32 %v610, 7
    %v612 = vsub.s32 %v609, %v611
    %v613 = vrot.slane %v575, %v612
    %v614 = vcombine.low %v584, %v584
    %v616 = vunpack.c.l.s4 1983009808
    %v617 = vunpack.c.0.s8 %v616
    %v618 = vlaneseq
    %v619 = vshrl.u32 %v618, 7
    %v620 = vsub.s32 %v617, %v619
    %v621 = vrot.slane %v614, %v620
    %v622 = vcombine.low %v621, %v621
    %vm624 = vcmask 195584
    %v625 = vsel %vm624, %v606, 0
    %v627 = vsel %vm624, %v613, 0
    %629 = vmatprep.subr.mxu0 0.0
    %630 = vmatpush1.msra.mxu0 %v576
    %631 = vmatprep.subr.mxu0 0.0
    %632 = vmatpush1.msra.mxu0 %v577
    %633 = vmatprep.subr.mxu0 0.0
    %634 = vmatpush1.msra.mxu0 %v578
    %635 = vmatprep.subr.mxu0 0.0
    %636 = vmatpush1.msra.mxu0 0.0
    %637 = vmatprep.subr.mxu0 0.0
    %638 = vmatpush1.msra.mxu0 0.0
    %639 = vmatprep.subr.mxu0 0.0
    %640 = vmatpush1.msra.mxu0 0.0
    %641 = vmatprep.subr.mxu0 0.0
    %642 = vmatpush1.msra.mxu0 0.0
    %643 = vmatprep.subr.mxu0 0.0
    %644 = vmatpush1.msra.mxu0 0.0
    %645 = vmatprep.subr.mxu0 0.0
    %646 = vmatpush1.msra.mxu0 0.0
    %647 = vmatprep.subr.mxu0 0.0
    %648 = vmatpush1.msra.mxu0 0.0
    %649 = vmatprep.subr.mxu0 0.0
    %650 = vmatpush1.msra.mxu0 0.0
    %651 = vmatprep.subr.mxu0 0.0
    %652 = vmatpush1.msra.mxu0 0.0
    %653 = vmatprep.subr.mxu0 0.0
    %654 = vmatpush1.msra.mxu0 0.0
    %655 = vmatprep.subr.mxu0 0.0
    %656 = vmatpush1.msra.mxu0 0.0
    %657 = vmatprep.subr.mxu0 0.0
    %658 = vmatpush1.msra.mxu0 0.0
    %659 = vmatprep.subr.mxu0 0.0
    %660 = vmatpush1.msra.mxu0 0.0
    %661 = vmatprep.subr.mxu0 0.0
    %662 = vmatpush1.msra.mxu0 0.0
    %663 = vmatprep.subr.mxu0 0.0
    %664 = vmatpush1.msra.mxu0 0.0
    %665 = vmatprep.subr.mxu0 0.0
    %666 = vmatpush1.msra.mxu0 0.0
    %667 = vmatprep.subr.mxu0 0.0
    %668 = vmatpush1.msra.mxu0 0.0
    %669 = vmatprep.subr.mxu0 0.0
    %670 = vmatpush1.msra.mxu0 0.0
    %671 = vmatprep.subr.mxu0 0.0
    %672 = vmatpush1.msra.mxu0 0.0
    %673 = vmatprep.subr.mxu0 0.0
    %674 = vmatpush1.msra.mxu0 0.0
    %675 = vmatprep.subr.mxu0 0.0
    %676 = vmatpush1.msra.mxu0 0.0
    %677 = vmatprep.subr.mxu0 0.0
    %678 = vmatpush1.msra.mxu0 0.0
    %679 = vmatprep.subr.mxu0 0.0
    %680 = vmatpush1.msra.mxu0 0.0
    %681 = vmatprep.subr.mxu0 0.0
    %682 = vmatpush1.msra.mxu0 0.0
    %683 = vmatprep.subr.mxu0 0.0
    %684 = vmatpush1.msra.mxu0 0.0
    %685 = vmatprep.subr.mxu0 0.0
    %686 = vmatpush1.msra.mxu0 0.0
    %687 = vmatprep.subr.mxu0 0.0
    %688 = vmatpush1.msra.mxu0 0.0
    %689 = vmatprep.subr.mxu0 0.0
    %690 = vmatpush1.msra.mxu0 0.0
    %691 = vmatprep.subr.mxu0 0.0
    %692 = vmatpush1.msra.mxu0 0.0
    %693 = vmatprep.mubr.f32.mxu0 0.0
    %694 = vmatmul.mubr.f32.gmra.mrb[0].mxu0 %v625
    %v695 = vpop.f32.mrb[0].mxu0
    %v696 = vadd.f32 %v622, %v695
    %v697 = vpop.f32.mrb[0].mxu0
    %698 = vmatprep.mubr.f32.mxu0 0.0
    %699 = vmatmul.mubr.f32.gmra.mrb[0].mxu0 %v627
    %v700 = vpop.f32.mrb[0].mxu0
    %v701 = vpop.f32.mrb[0].mxu0
    %702 = vdwg.mxu0
    %v704 = vcombine.high %v696, %v696
    %v706 = vunpack.c.l.s4 1983009808
    %v707 = vunpack.c.0.s8 %v706
    %v708 = vlaneseq
    %v709 = vshrl.u32 %v708, 7
    %v710 = vsub.s32 %v707, %v709
    %v711 = vrot.slane %v696, %v710
    %v713 = vunpack.c.l.s4 1983009808
    %v714 = vunpack.c.0.s8 %v713
    %v715 = vlaneseq
    %v716 = vshrl.u32 %v715, 7
    %v717 = vsub.s32 %v714, %v716
    %v718 = vrot.slane %v704, %v717
    %v719 = vcombine.high %v711, %v711
    %v720 = vcombine.high %v718, %v718
    %v725 = vmax.f32 %v711, %v719
    %v726 = vmax.f32 %v725, 0.0
    %v727 = vld [vmem:[#allocation5] sm:$0xff]
    %v728 = vmax.f32 %v718, %v720
    %v729 = vmax.f32 %v728, 0.0
    %s730 = scalar_lea.vmem [#allocation5], 8
    %v731 = vld [vmem:[%s730] sm:$0xff]
    %v733 = vsel %vm191, %v729, 0
    %735 = vmatprep.subr.mxu0 0.0
    %736 = vmatpush1.msra.mxu0 %v731
    %737 = vmatprep.subr.mxu0 0.0
    %738 = vmatpush1.msra.mxu0 0.0
    %739 = vmatprep.subr.mxu0 0.0
    %740 = vmatpush1.msra.mxu0 0.0
    %741 = vmatprep.subr.mxu0 0.0
    %742 = vmatpush1.msra.mxu0 0.0
    %743 = vmatprep.subr.mxu0 0.0
    %744 = vmatpush1.msra.mxu0 0.0
    %745 = vmatprep.subr.mxu0 0.0
    %746 = vmatpush1.msra.mxu0 0.0
    %747 = vmatprep.subr.mxu0 0.0
    %748 = vmatpush1.msra.mxu0 0.0
    %749 = vmatprep.subr.mxu0 0.0
    %750 = vmatpush1.msra.mxu0 0.0
    %751 = vmatprep.subr.mxu0 0.0
    %752 = vmatpush1.msra.mxu0 0.0
    %753 = vmatprep.subr.mxu0 0.0
    %754 = vmatpush1.msra.mxu0 0.0
    %755 = vmatprep.subr.mxu0 0.0
    %756 = vmatpush1.msra.mxu0 0.0
    %757 = vmatprep.subr.mxu0 0.0
    %758 = vmatpush1.msra.mxu0 0.0
    %759 = vmatprep.subr.mxu0 0.0
    %760 = vmatpush1.msra.mxu0 0.0
    %761 = vmatprep.subr.mxu0 0.0
    %762 = vmatpush1.msra.mxu0 0.0
    %763 = vmatprep.subr.mxu0 0.0
    %764 = vmatpush1.msra.mxu0 0.0
    %765 = vmatprep.subr.mxu0 0.0
    %766 = vmatpush1.msra.mxu0 0.0
    %767 = vmatprep.subr.mxu0 0.0
    %768 = vmatpush1.msra.mxu0 0.0
    %769 = vmatprep.subr.mxu0 0.0
    %770 = vmatpush1.msra.mxu0 0.0
    %771 = vmatprep.subr.mxu0 0.0
    %772 = vmatpush1.msra.mxu0 0.0
    %773 = vmatprep.subr.mxu0 0.0
    %774 = vmatpush1.msra.mxu0 0.0
    %775 = vmatprep.subr.mxu0 0.0
    %776 = vmatpush1.msra.mxu0 0.0
    %777 = vmatprep.subr.mxu0 0.0
    %778 = vmatpush1.msra.mxu0 0.0
    %779 = vmatprep.subr.mxu0 0.0
    %780 = vmatpush1.msra.mxu0 0.0
    %781 = vmatprep.subr.mxu0 0.0
    %782 = vmatpush1.msra.mxu0 0.0
    %783 = vmatprep.subr.mxu0 0.0
    %784 = vmatpush1.msra.mxu0 0.0
    %785 = vmatprep.subr.mxu0 0.0
    %786 = vmatpush1.msra.mxu0 0.0
    %787 = vmatprep.subr.mxu0 0.0
    %788 = vmatpush1.msra.mxu0 0.0
    %789 = vmatprep.subr.mxu0 0.0
    %790 = vmatpush1.msra.mxu0 0.0
    %791 = vmatprep.subr.mxu0 0.0
    %792 = vmatpush1.msra.mxu0 0.0
    %793 = vmatprep.subr.mxu0 0.0
    %794 = vmatpush1.msra.mxu0 0.0
    %795 = vmatprep.subr.mxu0 0.0
    %796 = vmatpush1.msra.mxu0 0.0
    %797 = vmatprep.subr.mxu0 0.0
    %798 = vmatpush1.msra.mxu0 0.0
    %799 = vmatprep.mubr.f32.mxu0 0.0
    %800 = vmatmul.mubr.f32.gmra.mrb[0].mxu0 %v733
    %v801 = vpop.f32.mrb[0].mxu0
    %v802 = vadd.f32 0.0, %v801
    %v803 = vpop.f32.mrb[0].mxu0
    %804 = vdwg.mxu0
    %v806 = vsel %vm191, %v726, 0
    %808 = vmatprep.subr.mxu0 0.0
    %809 = vmatpush1.msra.mxu0 %v727
    %810 = vmatprep.subr.mxu0 0.0
    %811 = vmatpush1.msra.mxu0 0.0
    %812 = vmatprep.subr.mxu0 0.0
    %813 = vmatpush1.msra.mxu0 0.0
    %814 = vmatprep.subr.mxu0 0.0
    %815 = vmatpush1.msra.mxu0 0.0
    %816 = vmatprep.subr.mxu0 0.0
    %817 = vmatpush1.msra.mxu0 0.0
    %818 = vmatprep.subr.mxu0 0.0
    %819 = vmatpush1.msra.mxu0 0.0
    %820 = vmatprep.subr.mxu0 0.0
    %821 = vmatpush1.msra.mxu0 0.0
    %822 = vmatprep.subr.mxu0 0.0
    %823 = vmatpush1.msra.mxu0 0.0
    %824 = vmatprep.subr.mxu0 0.0
    %825 = vmatpush1.msra.mxu0 0.0
    %826 = vmatprep.subr.mxu0 0.0
    %827 = vmatpush1.msra.mxu0 0.0
    %828 = vmatprep.subr.mxu0 0.0
    %829 = vmatpush1.msra.mxu0 0.0
    %830 = vmatprep.subr.mxu0 0.0
    %831 = vmatpush1.msra.mxu0 0.0
    %832 = vmatprep.subr.mxu0 0.0
    %833 = vmatpush1.msra.mxu0 0.0
    %834 = vmatprep.subr.mxu0 0.0
    %835 = vmatpush1.msra.mxu0 0.0
    %836 = vmatprep.subr.mxu0 0.0
    %837 = vmatpush1.msra.mxu0 0.0
    %838 = vmatprep.subr.mxu0 0.0
    %839 = vmatpush1.msra.mxu0 0.0
    %840 = vmatprep.subr.mxu0 0.0
    %841 = vmatpush1.msra.mxu0 0.0
    %842 = vmatprep.subr.mxu0 0.0
    %843 = vmatpush1.msra.mxu0 0.0
    %844 = vmatprep.subr.mxu0 0.0
    %845 = vmatpush1.msra.mxu0 0.0
    %846 = vmatprep.subr.mxu0 0.0
    %847 = vmatpush1.msra.mxu0 0.0
    %848 = vmatprep.subr.mxu0 0.0
    %849 = vmatpush1.msra.mxu0 0.0
    %850 = vmatprep.subr.mxu0 0.0
    %851 = vmatpush1.msra.mxu0 0.0
    %852 = vmatprep.subr.mxu0 0.0
    %853 = vmatpush1.msra.mxu0 0.0
    %854 = vmatprep.subr.mxu0 0.0
    %855 = vmatpush1.msra.mxu0 0.0
    %856 = vmatprep.subr.mxu0 0.0
    %857 = vmatpush1.msra.mxu0 0.0
    %858 = vmatprep.subr.mxu0 0.0
    %859 = vmatpush1.msra.mxu0 0.0
    %860 = vmatprep.subr.mxu0 0.0
    %861 = vmatpush1.msra.mxu0 0.0
    %862 = vmatprep.subr.mxu0 0.0
    %863 = vmatpush1.msra.mxu0 0.0
    %864 = vmatprep.subr.mxu0 0.0
    %865 = vmatpush1.msra.mxu0 0.0
    %866 = vmatprep.subr.mxu0 0.0
    %867 = vmatpush1.msra.mxu0 0.0
    %868 = vmatprep.subr.mxu0 0.0
    %869 = vmatpush1.msra.mxu0 0.0
    %870 = vmatprep.subr.mxu0 0.0
    %871 = vmatpush1.msra.mxu0 0.0
    %872 = vmatprep.mubr.f32.mxu0 0.0
    %873 = vmatmul.mubr.f32.gmra.mrb[0].mxu0 %v806
    %v874 = vpop.f32.mrb[0].mxu0
    %v875 = vadd.f32 %v802, %v874
    %v876 = vpop.f32.mrb[0].mxu0
    %877 = vdwg.mxu0
    %s878 = scalar_lea.vmem %s0, 32
    %v879 = vld [vmem:[%s878] sm:$0x3]
    %v880 = vld [vmem:[%s878 + $0x2] sm:$0x3]
    %v881 = vld [vmem:[%s878 + $0x4] sm:$0x3]
    %v882 = vld [vmem:[%s878 + $0x6] sm:$0x3]
    %v883 = vld [vmem:[%s878 + $0x8] sm:$0x3]
    %v884 = vld [vmem:[%s878 + $0xa] sm:$0x3]
    %v885 = vld [vmem:[%s878 + $0xc] sm:$0x3]
    %v886 = vld [vmem:[%s878 + $0xe] sm:$0x3]
    %v887 = vld [vmem:[%s878 + $0x10] sm:$0x3]
    %v888 = vld [vmem:[%s878 + $0x12] sm:$0x3]
    %v889 = vld [vmem:[%s878 + $0x14] sm:$0x3]
    %v890 = vld [vmem:[%s878 + $0x16] sm:$0x3]
    %v891 = vld [vmem:[%s878 + $0x18] sm:$0x3]
    %v892 = vld [vmem:[%s878 + $0x1a] sm:$0x3]
    %v893 = vld [vmem:[%s878 + $0x1c] sm:$0x3]
    %v894 = vld [vmem:[%s878 + $0x1e] sm:$0x3]
    %909 = vrot.lane.b32.xlu0 %v880, 4
    %v910 = vpop.permute.xlu0 %909
    %911 = vrot.lane.b32.xlu0 %v881, 4
    %v912 = vpop.permute.xlu0 %911
    %913 = vrot.lane.b32.xlu0 %v882, 4
    %v914 = vpop.permute.xlu0 %913
    %915 = vrot.lane.b32.xlu0 %v883, 4
    %v916 = vpop.permute.xlu0 %915
    %917 = vrot.lane.b32.xlu0 %v884, 4
    %v918 = vpop.permute.xlu0 %917
    %919 = vrot.lane.b32.xlu0 %v885, 4
    %v920 = vpop.permute.xlu0 %919
    %921 = vrot.lane.b32.xlu0 %v886, 4
    %v922 = vpop.permute.xlu0 %921
    %923 = vrot.lane.b32.xlu0 %v887, 4
    %v924 = vpop.permute.xlu0 %923
    %925 = vrot.lane.b32.xlu0 %v888, 4
    %v926 = vpop.permute.xlu0 %925
    %927 = vrot.lane.b32.xlu0 %v889, 4
    %v928 = vpop.permute.xlu0 %927
    %929 = vrot.lane.b32.xlu0 %v890, 4
    %v930 = vpop.permute.xlu0 %929
    %931 = vrot.lane.b32.xlu0 %v891, 4
    %v932 = vpop.permute.xlu0 %931
    %933 = vrot.lane.b32.xlu0 %v892, 4
    %v934 = vpop.permute.xlu0 %933
    %935 = vrot.lane.b32.xlu0 %v893, 4
    %v936 = vpop.permute.xlu0 %935
    %952 = vrot.lane.b32.xlu0 %v881, 8
    %v953 = vpop.permute.xlu0 %952
    %954 = vrot.lane.b32.xlu0 %v882, 8
    %v955 = vpop.permute.xlu0 %954
    %956 = vrot.lane.b32.xlu0 %v883, 8
    %v957 = vpop.permute.xlu0 %956
    %958 = vrot.lane.b32.xlu0 %v884, 8
    %v959 = vpop.permute.xlu0 %958
    %960 = vrot.lane.b32.xlu0 %v885, 8
    %v961 = vpop.permute.xlu0 %960
    %962 = vrot.lane.b32.xlu0 %v886, 8
    %v963 = vpop.permute.xlu0 %962
    %964 = vrot.lane.b32.xlu0 %v887, 8
    %v965 = vpop.permute.xlu0 %964
    %966 = vrot.lane.b32.xlu0 %v888, 8
    %v967 = vpop.permute.xlu0 %966
    %968 = vrot.lane.b32.xlu0 %v889, 8
    %v969 = vpop.permute.xlu0 %968
    %970 = vrot.lane.b32.xlu0 %v890, 8
    %v971 = vpop.permute.xlu0 %970
    %972 = vrot.lane.b32.xlu0 %v891, 8
    %v973 = vpop.permute.xlu0 %972
    %974 = vrot.lane.b32.xlu0 %v892, 8
    %v975 = vpop.permute.xlu0 %974
    %976 = vrot.lane.b32.xlu0 %v893, 8
    %v977 = vpop.permute.xlu0 %976
    %978 = vrot.lane.b32.xlu0 %v894, 8
    %v979 = vpop.permute.xlu0 %978
    %v994 = vsel %vm176, %v879, %v910
    %v995 = vsel %vm176, %v880, %v912
    %v996 = vsel %vm176, %v881, %v914
    %v997 = vsel %vm176, %v882, %v916
    %v998 = vsel %vm176, %v883, %v918
    %v999 = vsel %vm176, %v884, %v920
    %v1000 = vsel %vm176, %v885, %v922
    %v1001 = vsel %vm176, %v886, %v924
    %v1002 = vsel %vm176, %v887, %v926
    %v1003 = vsel %vm176, %v888, %v928
    %v1004 = vsel %vm176, %v889, %v930
    %v1005 = vsel %vm176, %v890, %v932
    %v1006 = vsel %vm176, %v891, %v934
    %v1007 = vsel %vm176, %v892, %v936
    %v1008 = vsel %vm191, %v994, %v953
    %v1009 = vsel %vm191, %v995, %v955
    %v1010 = vsel %vm191, %v996, %v957
    %v1011 = vsel %vm191, %v997, %v959
    %v1012 = vsel %vm191, %v998, %v961
    %v1013 = vsel %vm191, %v999, %v963
    %v1014 = vsel %vm191, %v1000, %v965
    %v1015 = vsel %vm191, %v1001, %v967
    %v1016 = vsel %vm191, %v1002, %v969
    %v1017 = vsel %vm191, %v1003, %v971
    %v1018 = vsel %vm191, %v1004, %v973
    %v1019 = vsel %vm191, %v1005, %v975
    %v1020 = vsel %vm191, %v1006, %v977
    %v1021 = vsel %vm191, %v1007, %v979
    %s1022 = scalar_lea.vmem [#allocation2], 16
    %v1023 = vld [vmem:[%s1022] sm:$0xff]
    %v1024 = vld [vmem:[%s1022 + $0x8] sm:$0xf]
    %s1025 = scalar_lea.vmem %s2, 1
    %v1026 = vld [vmem:[%s1025] sm:$0x1]
    %v1028 = vlaneseq
    %v1029 = vshrl.u32 %v1028, 7
    %v1030 = vsub.s32 0, %v1029
    %v1031 = vrot.slane %v1026, %v1030
    %v1046 = vcombine.low %v1008, %v1009
    %v1047 = vcombine.low %v1010, %v1011
    %v1049 = vunpack.c.l.s4 1983009808
    %v1050 = vunpack.c.0.s8 %v1049
    %v1051 = vlaneseq
    %v1052 = vshrl.u32 %v1051, 7
    %v1053 = vsub.s32 %v1050, %v1052
    %v1054 = vrot.slane %v1046, %v1053
    %v1056 = vunpack.c.l.s4 1983009808
    %v1057 = vunpack.c.0.s8 %v1056
    %v1058 = vlaneseq
    %v1059 = vshrl.u32 %v1058, 7
    %v1060 = vsub.s32 %v1057, %v1059
    %v1061 = vrot.slane %v1047, %v1060
    %v1062 = vcombine.low %v1054, %v1061
    %v1063 = vcombine.low %v1012, %v1013
    %v1064 = vcombine.low %v1014, %v1015
    %v1066 = vunpack.c.l.s4 1983009808
    %v1067 = vunpack.c.0.s8 %v1066
    %v1068 = vlaneseq
    %v1069 = vshrl.u32 %v1068, 7
    %v1070 = vsub.s32 %v1067, %v1069
    %v1071 = vrot.slane %v1063, %v1070
    %v1073 = vunpack.c.l.s4 1983009808
    %v1074 = vunpack.c.0.s8 %v1073
    %v1075 = vlaneseq
    %v1076 = vshrl.u32 %v1075, 7
    %v1077 = vsub.s32 %v1074, %v1076
    %v1078 = vrot.slane %v1064, %v1077
    %v1079 = vcombine.low %v1071, %v1078
    %v1080 = vcombine.low %v1016, %v1017
    %v1081 = vcombine.low %v1018, %v1019
    %v1083 = vunpack.c.l.s4 1983009808
    %v1084 = vunpack.c.0.s8 %v1083
    %v1085 = vlaneseq
    %v1086 = vshrl.u32 %v1085, 7
    %v1087 = vsub.s32 %v1084, %v1086
    %v1088 = vrot.slane %v1080, %v1087
    %v1090 = vunpack.c.l.s4 1983009808
    %v1091 = vunpack.c.0.s8 %v1090
    %v1092 = vlaneseq
    %v1093 = vshrl.u32 %v1092, 7
    %v1094 = vsub.s32 %v1091, %v1093
    %v1095 = vrot.slane %v1081, %v1094
    %v1096 = vcombine.low %v1088, %v1095
    %v1097 = vcombine.low %v1020, %v1021
    %v1099 = vunpack.c.l.s4 1983009808
    %v1100 = vunpack.c.0.s8 %v1099
    %v1101 = vlaneseq
    %v1102 = vshrl.u32 %v1101, 7
    %v1103 = vsub.s32 %v1100, %v1102
    %v1104 = vrot.slane %v1097, %v1103
    %v1105 = vcombine.low %v1031, %v1031
    %v1107 = vunpack.c.l.s4 1983009808
    %v1108 = vunpack.c.0.s8 %v1107
    %v1109 = vlaneseq
    %v1110 = vshrl.u32 %v1109, 7
    %v1111 = vsub.s32 %v1108, %v1110
    %v1112 = vrot.slane %v1105, %v1111
    %v1113 = vcombine.low %v1112, %v1112
    %v1116 = vsel %vm298, %v1062, 0
    %v1118 = vsel %vm298, %v1079, 0
    %v1120 = vsel %vm298, %v1096, 0
    %v1122 = vsel %vm298, %v1104, 0
    %v1125 = vsel %vm307, %v1024, 0
    %1127 = vmatprep.subr.mxu0 0.0
    %1128 = vmatpush1.msra.mxu0 %v1023
    %1129 = vmatprep.subr.mxu0 0.0
    %1130 = vmatpush1.msra.mxu0 %v1125
    %1131 = vmatprep.subr.mxu0 0.0
    %1132 = vmatpush1.msra.mxu0 0.0
    %1133 = vmatprep.subr.mxu0 0.0
    %1134 = vmatpush1.msra.mxu0 0.0
    %1135 = vmatprep.subr.mxu0 0.0
    %1136 = vmatpush1.msra.mxu0 0.0
    %1137 = vmatprep.subr.mxu0 0.0
    %1138 = vmatpush1.msra.mxu0 0.0
    %1139 = vmatprep.subr.mxu0 0.0
    %1140 = vmatpush1.msra.mxu0 0.0
    %1141 = vmatprep.subr.mxu0 0.0
    %1142 = vmatpush1.msra.mxu0 0.0
    %1143 = vmatprep.subr.mxu0 0.0
    %1144 = vmatpush1.msra.mxu0 0.0
    %1145 = vmatprep.subr.mxu0 0.0
    %1146 = vmatpush1.msra.mxu0 0.0
    %1147 = vmatprep.subr.mxu0 0.0
    %1148 = vmatpush1.msra.mxu0 0.0
    %1149 = vmatprep.subr.mxu0 0.0
    %1150 = vmatpush1.msra.mxu0 0.0
    %1151 = vmatprep.subr.mxu0 0.0
    %1152 = vmatpush1.msra.mxu0 0.0
    %1153 = vmatprep.subr.mxu0 0.0
    %1154 = vmatpush1.msra.mxu0 0.0
    %1155 = vmatprep.subr.mxu0 0.0
    %1156 = vmatpush1.msra.mxu0 0.0
    %1157 = vmatprep.subr.mxu0 0.0
    %1158 = vmatpush1.msra.mxu0 0.0
    %1159 = vmatprep.subr.mxu0 0.0
    %1160 = vmatpush1.msra.mxu0 0.0
    %1161 = vmatprep.subr.mxu0 0.0
    %1162 = vmatpush1.msra.mxu0 0.0
    %1163 = vmatprep.subr.mxu0 0.0
    %1164 = vmatpush1.msra.mxu0 0.0
    %1165 = vmatprep.subr.mxu0 0.0
    %1166 = vmatpush1.msra.mxu0 0.0
    %1167 = vmatprep.subr.mxu0 0.0
    %1168 = vmatpush1.msra.mxu0 0.0
    %1169 = vmatprep.subr.mxu0 0.0
    %1170 = vmatpush1.msra.mxu0 0.0
    %1171 = vmatprep.subr.mxu0 0.0
    %1172 = vmatpush1.msra.mxu0 0.0
    %1173 = vmatprep.subr.mxu0 0.0
    %1174 = vmatpush1.msra.mxu0 0.0
    %1175 = vmatprep.subr.mxu0 0.0
    %1176 = vmatpush1.msra.mxu0 0.0
    %1177 = vmatprep.subr.mxu0 0.0
    %1178 = vmatpush1.msra.mxu0 0.0
    %1179 = vmatprep.subr.mxu0 0.0
    %1180 = vmatpush1.msra.mxu0 0.0
    %1181 = vmatprep.subr.mxu0 0.0
    %1182 = vmatpush1.msra.mxu0 0.0
    %1183 = vmatprep.subr.mxu0 0.0
    %1184 = vmatpush1.msra.mxu0 0.0
    %1185 = vmatprep.subr.mxu0 0.0
    %1186 = vmatpush1.msra.mxu0 0.0
    %1187 = vmatprep.subr.mxu0 0.0
    %1188 = vmatpush1.msra.mxu0 0.0
    %1189 = vmatprep.subr.mxu0 0.0
    %1190 = vmatpush1.msra.mxu0 0.0
    %1191 = vmatprep.mubr.f32.mxu0 0.0
    %1192 = vmatmul.mubr.f32.gmra.mrb[0].mxu0 %v1116
    %v1193 = vpop.f32.mrb[0].mxu0
    %v1194 = vadd.f32 %v1113, %v1193
    %v1195 = vpop.f32.mrb[0].mxu0
    %1196 = vmatprep.mubr.f32.mxu0 0.0
    %1197 = vmatmul.mubr.f32.gmra.mrb[0].mxu0 %v1118
    %v1198 = vpop.f32.mrb[0].mxu0
    %v1199 = vadd.f32 %v1113, %v1198
    %v1200 = vpop.f32.mrb[0].mxu0
    %1201 = vmatprep.mubr.f32.mxu0 0.0
    %1202 = vmatmul.mubr.f32.gmra.mrb[0].mxu0 %v1120
    %v1203 = vpop.f32.mrb[0].mxu0
    %v1204 = vadd.f32 %v1113, %v1203
    %v1205 = vpop.f32.mrb[0].mxu0
    %1206 = vmatprep.mubr.f32.mxu0 0.0
    %1207 = vmatmul.mubr.f32.gmra.mrb[0].mxu0 %v1122
    %v1208 = vpop.f32.mrb[0].mxu0
    %v1209 = vadd.f32 %v1112, %v1208
    %v1210 = vpop.f32.mrb[0].mxu0
    %1211 = vdwg.mxu0
    %v1216 = vcombine.high %v1194, %v1194
    %v1218 = vunpack.c.l.s4 1983009808
    %v1219 = vunpack.c.0.s8 %v1218
    %v1220 = vlaneseq
    %v1221 = vshrl.u32 %v1220, 7
    %v1222 = vsub.s32 %v1219, %v1221
    %v1223 = vrot.slane %v1194, %v1222
    %v1225 = vunpack.c.l.s4 1983009808
    %v1226 = vunpack.c.0.s8 %v1225
    %v1227 = vlaneseq
    %v1228 = vshrl.u32 %v1227, 7
    %v1229 = vsub.s32 %v1226, %v1228
    %v1230 = vrot.slane %v1216, %v1229
    %v1231 = vcombine.high %v1223, %v1223
    %v1232 = vcombine.high %v1230, %v1230
    %v1233 = vcombine.high %v1199, %v1199
    %v1235 = vunpack.c.l.s4 1983009808
    %v1236 = vunpack.c.0.s8 %v1235
    %v1237 = vlaneseq
    %v1238 = vshrl.u32 %v1237, 7
    %v1239 = vsub.s32 %v1236, %v1238
    %v1240 = vrot.slane %v1199, %v1239
    %v1242 = vunpack.c.l.s4 1983009808
    %v1243 = vunpack.c.0.s8 %v1242
    %v1244 = vlaneseq
    %v1245 = vshrl.u32 %v1244, 7
    %v1246 = vsub.s32 %v1243, %v1245
    %v1247 = vrot.slane %v1233, %v1246
    %v1248 = vcombine.high %v1240, %v1240
    %v1249 = vcombine.high %v1247, %v1247
    %v1250 = vcombine.high %v1204, %v1204
    %v1252 = vunpack.c.l.s4 1983009808
    %v1253 = vunpack.c.0.s8 %v1252
    %v1254 = vlaneseq
    %v1255 = vshrl.u32 %v1254, 7
    %v1256 = vsub.s32 %v1253, %v1255
    %v1257 = vrot.slane %v1204, %v1256
    %v1259 = vunpack.c.l.s4 1983009808
    %v1260 = vunpack.c.0.s8 %v1259
    %v1261 = vlaneseq
    %v1262 = vshrl.u32 %v1261, 7
    %v1263 = vsub.s32 %v1260, %v1262
    %v1264 = vrot.slane %v1250, %v1263
    %v1265 = vcombine.high %v1257, %v1257
    %v1266 = vcombine.high %v1264, %v1264
    %v1268 = vunpack.c.l.s4 1983009808
    %v1269 = vunpack.c.0.s8 %v1268
    %v1270 = vlaneseq
    %v1271 = vshrl.u32 %v1270, 7
    %v1272 = vsub.s32 %v1269, %v1271
    %v1273 = vrot.slane %v1209, %v1272
    %v1274 = vcombine.high %v1273, %v1273
    %v1289 = vmax.f32 %v1223, %v1231
    %v1290 = vmax.f32 %v1289, 0.0
    %v1291 = vmax.f32 %v1230, %v1232
    %v1292 = vmax.f32 %v1291, 0.0
    %v1293 = vmax.f32 %v1240, %v1248
    %v1294 = vmax.f32 %v1293, 0.0
    %v1295 = vmax.f32 %v1247, %v1249
    %v1296 = vmax.f32 %v1295, 0.0
    %v1297 = vmax.f32 %v1257, %v1265
    %v1298 = vmax.f32 %v1297, 0.0
    %v1299 = vmax.f32 %v1264, %v1266
    %v1300 = vmax.f32 %v1299, 0.0
    %v1301 = vmax.f32 %v1273, %v1274
    %v1302 = vmax.f32 %v1301, 0.0
    %v1309 = vunpack.c.l.s4 1983009808
    %v1310 = vunpack.c.0.s8 %v1309
    %v1311 = vlaneseq
    %v1312 = vshrl.u32 %v1311, 7
    %v1313 = vsub.s32 %v1310, %v1312
    %v1314 = vrot.slane %v1292, %v1313
    %v1316 = vunpack.c.l.s4 1983009808
    %v1317 = vunpack.c.0.s8 %v1316
    %v1318 = vlaneseq
    %v1319 = vshrl.u32 %v1318, 7
    %v1320 = vsub.s32 %v1317, %v1319
    %v1321 = vrot.slane %v1294, %v1320
    %v1323 = vunpack.c.l.s4 1983009808
    %v1324 = vunpack.c.0.s8 %v1323
    %v1325 = vlaneseq
    %v1326 = vshrl.u32 %v1325, 7
    %v1327 = vsub.s32 %v1324, %v1326
    %v1328 = vrot.slane %v1296, %v1327
    %v1330 = vunpack.c.l.s4 1983009808
    %v1331 = vunpack.c.0.s8 %v1330
    %v1332 = vlaneseq
    %v1333 = vshrl.u32 %v1332, 7
    %v1334 = vsub.s32 %v1331, %v1333
    %v1335 = vrot.slane %v1298, %v1334
    %v1337 = vunpack.c.l.s4 1983009808
    %v1338 = vunpack.c.0.s8 %v1337
    %v1339 = vlaneseq
    %v1340 = vshrl.u32 %v1339, 7
    %v1341 = vsub.s32 %v1338, %v1340
    %v1342 = vrot.slane %v1300, %v1341
    %1343 = vrot.lane.b32.xlu0 %v1314, 8
    %v1344 = vpop.permute.xlu0 %1343
    %1345 = vrot.lane.b32.xlu0 %v1321, 8
    %v1346 = vpop.permute.xlu0 %1345
    %1347 = vrot.lane.b32.xlu0 %v1328, 8
    %v1348 = vpop.permute.xlu0 %1347
    %1349 = vrot.lane.b32.xlu0 %v1335, 8
    %v1350 = vpop.permute.xlu0 %1349
    %1351 = vrot.lane.b32.xlu0 %v1342, 8
    %v1352 = vpop.permute.xlu0 %1351
    %v1360 = vunpack.c.l.s4 1983009808
    %v1361 = vunpack.c.0.s8 %v1360
    %v1362 = vlaneseq
    %v1363 = vshrl.u32 %v1362, 7
    %v1364 = vsub.s32 %v1361, %v1363
    %v1365 = vrot.slane %v1302, %v1364
    %1366 = vrot.lane.b32.xlu0 %v1321, 16
    %v1367 = vpop.permute.xlu0 %1366
    %1368 = vrot.lane.b32.xlu0 %v1328, 16
    %v1369 = vpop.permute.xlu0 %1368
    %1370 = vrot.lane.b32.xlu0 %v1335, 16
    %v1371 = vpop.permute.xlu0 %1370
    %1372 = vrot.lane.b32.xlu0 %v1342, 16
    %v1373 = vpop.permute.xlu0 %1372
    %1374 = vrot.lane.b32.xlu0 %v1365, 16
    %v1375 = vpop.permute.xlu0 %1374
    %v1381 = vsel %vm191, %v1290, %v1344
    %v1382 = vsel %vm191, %v1292, %v1346
    %v1383 = vsel %vm191, %v1294, %v1348
    %v1384 = vsel %vm191, %v1296, %v1350
    %v1385 = vsel %vm191, %v1298, %v1352
    %v1386 = vsel %vm570, %v1381, %v1367
    %v1387 = vsel %vm570, %v1382, %v1369
    %v1388 = vsel %vm570, %v1383, %v1371
    %v1389 = vsel %vm570, %v1384, %v1373
    %v1390 = vsel %vm570, %v1385, %v1375
    %s1391 = scalar_lea.vmem %s3, 24
    %v1392 = vld [vmem:[%s1391] sm:$0xff]
    %v1393 = vld [vmem:[%s1391 + $0x8] sm:$0xff]
    %v1394 = vld [vmem:[%s1391 + $0x10] sm:$0xff]
    %s1395 = scalar_lea.vmem %s4, 1
    %v1396 = vld [vmem:[%s1395] sm:$0x1]
    %v1398 = vlaneseq
    %v1399 = vshrl.u32 %v1398, 7
    %v1400 = vsub.s32 0, %v1399
    %v1401 = vrot.slane %v1396, %v1400
    %v1407 = vcombine.low %v1386, %v1387
    %v1408 = vcombine.low %v1388, %v1389
    %v1410 = vunpack.c.l.s4 1983009808
    %v1411 = vunpack.c.0.s8 %v1410
    %v1412 = vlaneseq
    %v1413 = vshrl.u32 %v1412, 7
    %v1414 = vsub.s32 %v1411, %v1413
    %v1415 = vrot.slane %v1407, %v1414
    %v1417 = vunpack.c.l.s4 1983009808
    %v1418 = vunpack.c.0.s8 %v1417
    %v1419 = vlaneseq
    %v1420 = vshrl.u32 %v1419, 7
    %v1421 = vsub.s32 %v1418, %v1420
    %v1422 = vrot.slane %v1408, %v1421
    %v1423 = vcombine.low %v1415, %v1422
    %v1425 = vunpack.c.l.s4 1983009808
    %v1426 = vunpack.c.0.s8 %v1425
    %v1427 = vlaneseq
    %v1428 = vshrl.u32 %v1427, 7
    %v1429 = vsub.s32 %v1426, %v1428
    %v1430 = vrot.slane %v1390, %v1429
    %v1431 = vcombine.low %v1401, %v1401
    %v1433 = vunpack.c.l.s4 1983009808
    %v1434 = vunpack.c.0.s8 %v1433
    %v1435 = vlaneseq
    %v1436 = vshrl.u32 %v1435, 7
    %v1437 = vsub.s32 %v1434, %v1436
    %v1438 = vrot.slane %v1431, %v1437
    %v1439 = vcombine.low %v1438, %v1438
    %v1441 = vsel %vm624, %v1423, 0
    %v1443 = vsel %vm624, %v1430, 0
    %1445 = vmatprep.subr.mxu0 0.0
    %1446 = vmatpush1.msra.mxu0 %v1392
    %1447 = vmatprep.subr.mxu0 0.0
    %1448 = vmatpush1.msra.mxu0 %v1393
    %1449 = vmatprep.subr.mxu0 0.0
    %1450 = vmatpush1.msra.mxu0 %v1394
    %1451 = vmatprep.subr.mxu0 0.0
    %1452 = vmatpush1.msra.mxu0 0.0
    %1453 = vmatprep.subr.mxu0 0.0
    %1454 = vmatpush1.msra.mxu0 0.0
    %1455 = vmatprep.subr.mxu0 0.0
    %1456 = vmatpush1.msra.mxu0 0.0
    %1457 = vmatprep.subr.mxu0 0.0
    %1458 = vmatpush1.msra.mxu0 0.0
    %1459 = vmatprep.subr.mxu0 0.0
    %1460 = vmatpush1.msra.mxu0 0.0
    %1461 = vmatprep.subr.mxu0 0.0
    %1462 = vmatpush1.msra.mxu0 0.0
    %1463 = vmatprep.subr.mxu0 0.0
    %1464 = vmatpush1.msra.mxu0 0.0
    %1465 = vmatprep.subr.mxu0 0.0
    %1466 = vmatpush1.msra.mxu0 0.0
    %1467 = vmatprep.subr.mxu0 0.0
    %1468 = vmatpush1.msra.mxu0 0.0
    %1469 = vmatprep.subr.mxu0 0.0
    %1470 = vmatpush1.msra.mxu0 0.0
    %1471 = vmatprep.subr.mxu0 0.0
    %1472 = vmatpush1.msra.mxu0 0.0
    %1473 = vmatprep.subr.mxu0 0.0
    %1474 = vmatpush1.msra.mxu0 0.0
    %1475 = vmatprep.subr.mxu0 0.0
    %1476 = vmatpush1.msra.mxu0 0.0
    %1477 = vmatprep.subr.mxu0 0.0
    %1478 = vmatpush1.msra.mxu0 0.0
    %1479 = vmatprep.subr.mxu0 0.0
    %1480 = vmatpush1.msra.mxu0 0.0
    %1481 = vmatprep.subr.mxu0 0.0
    %1482 = vmatpush1.msra.mxu0 0.0
    %1483 = vmatprep.subr.mxu0 0.0
    %1484 = vmatpush1.msra.mxu0 0.0
    %1485 = vmatprep.subr.mxu0 0.0
    %1486 = vmatpush1.msra.mxu0 0.0
    %1487 = vmatprep.subr.mxu0 0.0
    %1488 = vmatpush1.msra.mxu0 0.0
    %1489 = vmatprep.subr.mxu0 0.0
    %1490 = vmatpush1.msra.mxu0 0.0
    %1491 = vmatprep.subr.mxu0 0.0
    %1492 = vmatpush1.msra.mxu0 0.0
    %1493 = vmatprep.subr.mxu0 0.0
    %1494 = vmatpush1.msra.mxu0 0.0
    %1495 = vmatprep.subr.mxu0 0.0
    %1496 = vmatpush1.msra.mxu0 0.0
    %1497 = vmatprep.subr.mxu0 0.0
    %1498 = vmatpush1.msra.mxu0 0.0
    %1499 = vmatprep.subr.mxu0 0.0
    %1500 = vmatpush1.msra.mxu0 0.0
    %1501 = vmatprep.subr.mxu0 0.0
    %1502 = vmatpush1.msra.mxu0 0.0
    %1503 = vmatprep.subr.mxu0 0.0
    %1504 = vmatpush1.msra.mxu0 0.0
    %1505 = vmatprep.subr.mxu0 0.0
    %1506 = vmatpush1.msra.mxu0 0.0
    %1507 = vmatprep.subr.mxu0 0.0
    %1508 = vmatpush1.msra.mxu0 0.0
    %1509 = vmatprep.mubr.f32.mxu0 0.0
    %1510 = vmatmul.mubr.f32.gmra.mrb[0].mxu0 %v1441
    %v1511 = vpop.f32.mrb[0].mxu0
    %v1512 = vadd.f32 %v1439, %v1511
    %v1513 = vpop.f32.mrb[0].mxu0
    %1514 = vmatprep.mubr.f32.mxu0 0.0
    %1515 = vmatmul.mubr.f32.gmra.mrb[0].mxu0 %v1443
    %v1516 = vpop.f32.mrb[0].mxu0
    %v1517 = vpop.f32.mrb[0].mxu0
    %1518 = vdwg.mxu0
    %v1520 = vcombine.high %v1512, %v1512
    %v1522 = vunpack.c.l.s4 1983009808
    %v1523 = vunpack.c.0.s8 %v1522
    %v1524 = vlaneseq
    %v1525 = vshrl.u32 %v1524, 7
    %v1526 = vsub.s32 %v1523, %v1525
    %v1527 = vrot.slane %v1512, %v1526
    %v1529 = vunpack.c.l.s4 1983009808
    %v1530 = vunpack.c.0.s8 %v1529
    %v1531 = vlaneseq
    %v1532 = vshrl.u32 %v1531, 7
    %v1533 = vsub.s32 %v1530, %v1532
    %v1534 = vrot.slane %v1520, %v1533
    %v1535 = vcombine.high %v1527, %v1527
    %v1536 = vcombine.high %v1534, %v1534
    %v1541 = vmax.f32 %v1527, %v1535
    %v1542 = vmax.f32 %v1541, 0.0
    %s1543 = scalar_lea.vmem [#allocation5], 16
    %v1544 = vld [vmem:[%s1543] sm:$0xff]
    %v1546 = vsel %vm191, %v1542, 0
    %1548 = vmatprep.subr.mxu0 0.0
    %1549 = vmatpush1.msra.mxu0 %v1544
    %1550 = vmatprep.subr.mxu0 0.0
    %1551 = vmatpush1.msra.mxu0 0.0
    %1552 = vmatprep.subr.mxu0 0.0
    %1553 = vmatpush1.msra.mxu0 0.0
    %1554 = vmatprep.subr.mxu0 0.0
    %1555 = vmatpush1.msra.mxu0 0.0
    %1556 = vmatprep.subr.mxu0 0.0
    %1557 = vmatpush1.msra.mxu0 0.0
    %1558 = vmatprep.subr.mxu0 0.0
    %1559 = vmatpush1.msra.mxu0 0.0
    %1560 = vmatprep.subr.mxu0 0.0
    %1561 = vmatpush1.msra.mxu0 0.0
    %1562 = vmatprep.subr.mxu0 0.0
    %1563 = vmatpush1.msra.mxu0 0.0
    %1564 = vmatprep.subr.mxu0 0.0
    %1565 = vmatpush1.msra.mxu0 0.0
    %1566 = vmatprep.subr.mxu0 0.0
    %1567 = vmatpush1.msra.mxu0 0.0
    %1568 = vmatprep.subr.mxu0 0.0
    %1569 = vmatpush1.msra.mxu0 0.0
    %1570 = vmatprep.subr.mxu0 0.0
    %1571 = vmatpush1.msra.mxu0 0.0
    %1572 = vmatprep.subr.mxu0 0.0
    %1573 = vmatpush1.msra.mxu0 0.0
    %1574 = vmatprep.subr.mxu0 0.0
    %1575 = vmatpush1.msra.mxu0 0.0
    %1576 = vmatprep.subr.mxu0 0.0
    %1577 = vmatpush1.msra.mxu0 0.0
    %1578 = vmatprep.subr.mxu0 0.0
    %1579 = vmatpush1.msra.mxu0 0.0
    %1580 = vmatprep.subr.mxu0 0.0
    %1581 = vmatpush1.msra.mxu0 0.0
    %1582 = vmatprep.subr.mxu0 0.0
    %1583 = vmatpush1.msra.mxu0 0.0
    %1584 = vmatprep.subr.mxu0 0.0
    %1585 = vmatpush1.msra.mxu0 0.0
    %1586 = vmatprep.subr.mxu0 0.0
    %1587 = vmatpush1.msra.mxu0 0.0
    %1588 = vmatprep.subr.mxu0 0.0
    %1589 = vmatpush1.msra.mxu0 0.0
    %1590 = vmatprep.subr.mxu0 0.0
    %1591 = vmatpush1.msra.mxu0 0.0
    %1592 = vmatprep.subr.mxu0 0.0
    %1593 = vmatpush1.msra.mxu0 0.0
    %1594 = vmatprep.subr.mxu0 0.0
    %1595 = vmatpush1.msra.mxu0 0.0
    %1596 = vmatprep.subr.mxu0 0.0
    %1597 = vmatpush1.msra.mxu0 0.0
    %1598 = vmatprep.subr.mxu0 0.0
    %1599 = vmatpush1.msra.mxu0 0.0
    %1600 = vmatprep.subr.mxu0 0.0
    %1601 = vmatpush1.msra.mxu0 0.0
    %1602 = vmatprep.subr.mxu0 0.0
    %1603 = vmatpush1.msra.mxu0 0.0
    %1604 = vmatprep.subr.mxu0 0.0
    %1605 = vmatpush1.msra.mxu0 0.0
    %1606 = vmatprep.subr.mxu0 0.0
    %1607 = vmatpush1.msra.mxu0 0.0
    %1608 = vmatprep.subr.mxu0 0.0
    %1609 = vmatpush1.msra.mxu0 0.0
    %1610 = vmatprep.subr.mxu0 0.0
    %1611 = vmatpush1.msra.mxu0 0.0
    %1612 = vmatprep.mubr.f32.mxu0 0.0
    %1613 = vmatmul.mubr.f32.gmra.mrb[0].mxu0 %v1546
    %v1614 = vpop.f32.mrb[0].mxu0
    %v1615 = vadd.f32 0.0, %v1614
    %v1616 = vpop.f32.mrb[0].mxu0
    %1617 = vdwg.mxu0
    %v1618 = vadd.f32 %v875, %v1615
    %v1619 = vmax.f32 %v1534, %v1536
    %v1620 = vmax.f32 %v1619, 0.0
    %s1621 = scalar_lea.vmem [#allocation5], 24
    %v1622 = vld [vmem:[%s1621] sm:$0xff]
    %v1624 = vsel %vm191, %v1620, 0
    %1626 = vmatprep.subr.mxu0 0.0
    %1627 = vmatpush1.msra.mxu0 %v1622
    %1628 = vmatprep.subr.mxu0 0.0
    %1629 = vmatpush1.msra.mxu0 0.0
    %1630 = vmatprep.subr.mxu0 0.0
    %1631 = vmatpush1.msra.mxu0 0.0
    %1632 = vmatprep.subr.mxu0 0.0
    %1633 = vmatpush1.msra.mxu0 0.0
    %1634 = vmatprep.subr.mxu0 0.0
    %1635 = vmatpush1.msra.mxu0 0.0
    %1636 = vmatprep.subr.mxu0 0.0
    %1637 = vmatpush1.msra.mxu0 0.0
    %1638 = vmatprep.subr.mxu0 0.0
    %1639 = vmatpush1.msra.mxu0 0.0
    %1640 = vmatprep.subr.mxu0 0.0
    %1641 = vmatpush1.msra.mxu0 0.0
    %1642 = vmatprep.subr.mxu0 0.0
    %1643 = vmatpush1.msra.mxu0 0.0
    %1644 = vmatprep.subr.mxu0 0.0
    %1645 = vmatpush1.msra.mxu0 0.0
    %1646 = vmatprep.subr.mxu0 0.0
    %1647 = vmatpush1.msra.mxu0 0.0
    %1648 = vmatprep.subr.mxu0 0.0
    %1649 = vmatpush1.msra.mxu0 0.0
    %1650 = vmatprep.subr.mxu0 0.0
    %1651 = vmatpush1.msra.mxu0 0.0
    %1652 = vmatprep.subr.mxu0 0.0
    %1653 = vmatpush1.msra.mxu0 0.0
    %1654 = vmatprep.subr.mxu0 0.0
    %1655 = vmatpush1.msra.mxu0 0.0
    %1656 = vmatprep.subr.mxu0 0.0
    %1657 = vmatpush1.msra.mxu0 0.0
    %1658 = vmatprep.subr.mxu0 0.0
    %1659 = vmatpush1.msra.mxu0 0.0
    %1660 = vmatprep.subr.mxu0 0.0
    %1661 = vmatpush1.msra.mxu0 0.0
    %1662 = vmatprep.subr.mxu0 0.0
    %1663 = vmatpush1.msra.mxu0 0.0
    %1664 = vmatprep.subr.mxu0 0.0
    %1665 = vmatpush1.msra.mxu0 0.0
    %1666 = vmatprep.subr.mxu0 0.0
    %1667 = vmatpush1.msra.mxu0 0.0
    %1668 = vmatprep.subr.mxu0 0.0
    %1669 = vmatpush1.msra.mxu0 0.0
    %1670 = vmatprep.subr.mxu0 0.0
    %1671 = vmatpush1.msra.mxu0 0.0
    %1672 = vmatprep.subr.mxu0 0.0
    %1673 = vmatpush1.msra.mxu0 0.0
    %1674 = vmatprep.subr.mxu0 0.0
    %1675 = vmatpush1.msra.mxu0 0.0
    %1676 = vmatprep.subr.mxu0 0.0
    %1677 = vmatpush1.msra.mxu0 0.0
    %1678 = vmatprep.subr.mxu0 0.0
    %1679 = vmatpush1.msra.mxu0 0.0
    %1680 = vmatprep.subr.mxu0 0.0
    %1681 = vmatpush1.msra.mxu0 0.0
    %1682 = vmatprep.subr.mxu0 0.0
    %1683 = vmatpush1.msra.mxu0 0.0
    %1684 = vmatprep.subr.mxu0 0.0
    %1685 = vmatpush1.msra.mxu0 0.0
    %1686 = vmatprep.subr.mxu0 0.0
    %1687 = vmatpush1.msra.mxu0 0.0
    %1688 = vmatprep.subr.mxu0 0.0
    %1689 = vmatpush1.msra.mxu0 0.0
    %1690 = vmatprep.mubr.f32.mxu0 0.0
    %1691 = vmatmul.mubr.f32.gmra.mrb[0].mxu0 %v1624
    %v1692 = vpop.f32.mrb[0].mxu0
    %v1693 = vadd.f32 0.0, %v1692
    %v1694 = vpop.f32.mrb[0].mxu0
    %1695 = vdwg.mxu0
    %v1696 = vadd.f32 %v1618, %v1693
    %v1697 = vld [vmem:[%s6] sm:$0x1]
    %v1699 = vlaneseq
    %v1700 = vshrl.u32 %v1699, 7
    %v1701 = vsub.s32 0, %v1700
    %v1702 = vrot.slane %v1697, %v1701
    %v1704 = vadd.f32 %v1696, %v1702
    %v1705 = vmax.f32 %v1704, 0.0
    %v1706 = vld [vmem:[%s7] sm:$0xff]
    %v1707 = vld [vmem:[%s7 + $0x8] sm:$0xff]
    %v1708 = vld [vmem:[%s7 + $0x10] sm:$0xff]
    %v1709 = vld [vmem:[%s7 + $0x18] sm:$0xff]
    %v1710 = vld [vmem:[%s8] sm:$0x1]
    %v1712 = vlaneseq
    %v1713 = vshrl.u32 %v1712, 7
    %v1714 = vsub.s32 0, %v1713
    %v1715 = vrot.slane %v1710, %v1714
    %vm1717 = vcmask 261120
    %v1719 = vsel %vm1717, %v1705, 0
    %1721 = vmatprep.subr.mxu0 0.0
    %1722 = vmatpush1.msra.mxu0 %v1706
    %1723 = vmatprep.subr.mxu0 0.0
    %1724 = vmatpush1.msra.mxu0 %v1707
    %1725 = vmatprep.subr.mxu0 0.0
    %1726 = vmatpush1.msra.mxu0 %v1708
    %1727 = vmatprep.subr.mxu0 0.0
    %1728 = vmatpush1.msra.mxu0 %v1709
    %1729 = vmatprep.subr.mxu0 0.0
    %1730 = vmatpush1.msra.mxu0 0.0
    %1731 = vmatprep.subr.mxu0 0.0
    %1732 = vmatpush1.msra.mxu0 0.0
    %1733 = vmatprep.subr.mxu0 0.0
    %1734 = vmatpush1.msra.mxu0 0.0
    %1735 = vmatprep.subr.mxu0 0.0
    %1736 = vmatpush1.msra.mxu0 0.0
    %1737 = vmatprep.subr.mxu0 0.0
    %1738 = vmatpush1.msra.mxu0 0.0
    %1739 = vmatprep.subr.mxu0 0.0
    %1740 = vmatpush1.msra.mxu0 0.0
    %1741 = vmatprep.subr.mxu0 0.0
    %1742 = vmatpush1.msra.mxu0 0.0
    %1743 = vmatprep.subr.mxu0 0.0
    %1744 = vmatpush1.msra.mxu0 0.0
    %1745 = vmatprep.subr.mxu0 0.0
    %1746 = vmatpush1.msra.mxu0 0.0
    %1747 = vmatprep.subr.mxu0 0.0
    %1748 = vmatpush1.msra.mxu0 0.0
    %1749 = vmatprep.subr.mxu0 0.0
    %1750 = vmatpush1.msra.mxu0 0.0
    %1751 = vmatprep.subr.mxu0 0.0
    %1752 = vmatpush1.msra.mxu0 0.0
    %1753 = vmatprep.subr.mxu0 0.0
    %1754 = vmatpush1.msra.mxu0 0.0
    %1755 = vmatprep.subr.mxu0 0.0
    %1756 = vmatpush1.msra.mxu0 0.0
    %1757 = vmatprep.subr.mxu0 0.0
    %1758 = vmatpush1.msra.mxu0 0.0
    %1759 = vmatprep.subr.mxu0 0.0
    %1760 = vmatpush1.msra.mxu0 0.0
    %1761 = vmatprep.subr.mxu0 0.0
    %1762 = vmatpush1.msra.mxu0 0.0
    %1763 = vmatprep.subr.mxu0 0.0
    %1764 = vmatpush1.msra.mxu0 0.0
    %1765 = vmatprep.subr.mxu0 0.0
    %1766 = vmatpush1.msra.mxu0 0.0
    %1767 = vmatprep.subr.mxu0 0.0
    %1768 = vmatpush1.msra.mxu0 0.0
    %1769 = vmatprep.subr.mxu0 0.0
    %1770 = vmatpush1.msra.mxu0 0.0
    %1771 = vmatprep.subr.mxu0 0.0
    %1772 = vmatpush1.msra.mxu0 0.0
    %1773 = vmatprep.subr.mxu0 0.0
    %1774 = vmatpush1.msra.mxu0 0.0
    %1775 = vmatprep.subr.mxu0 0.0
    %1776 = vmatpush1.msra.mxu0 0.0
    %1777 = vmatprep.subr.mxu0 0.0
    %1778 = vmatpush1.msra.mxu0 0.0
    %1779 = vmatprep.subr.mxu0 0.0
    %1780 = vmatpush1.msra.mxu0 0.0
    %1781 = vmatprep.subr.mxu0 0.0
    %1782 = vmatpush1.msra.mxu0 0.0
    %1783 = vmatprep.subr.mxu0 0.0
    %1784 = vmatpush1.msra.mxu0 0.0
    %1785 = vmatprep.mubr.f32.mxu0 0.0
    %1786 = vmatmul.mubr.f32.gmra.mrb[0].mxu0 %v1719
    %v1787 = vpop.f32.mrb[0].mxu0
    %v1788 = vadd.f32 %v1715, %v1787
    %v1789 = vpop.f32.mrb[0].mxu0
    %1790 = vdwg.mxu0
    %vm1791 = vcmask 33792
    %1792 = vst.msk [vmem:[#allocation7] sm:$0x3] %vm1791, %v1788
    // Predicated region
    $region46: #{_lambda_.1} parent=1 // pred_check
      _
    $region47: #{_lambda_.1} parent=1 // pred_check_branch
      %1794 = sbr.rel (0) target = $region49
    $region48: #{_lambda_.1} parent=1 // pred_region
      %s1796 = ssub.s32 32, 32
      %1797 = vsyncadd [#allocation4], %s1796
      %s1799 = sshll.u32 [#allocation7], 4
      %s1800 = int_to_ptr.vmem [resolvable:$true] %s1799
      %1802 = dma.vmem_to_hbm [thread:$0]  %s1800, 32, %s9, [#allocation4]
    $region49: #{_lambda_.1} parent=1 // pred_fallthru
      _
    // Predicated region
    $region50: #{_lambda_.1} parent=1 // pred_check
      _
    $region51: #{_lambda_.1} parent=1 // pred_check_branch
      %1804 = sbr.rel (0) target = $region53
    $region52: #{_lambda_.1} parent=1 // pred_region
      %1805 = dma.done [#allocation4], 32
    $region53: #{_lambda_.1} parent=1 // pred_fallthru
      _
    %1806 = vsyncpa [#allocation3], 1
    %1807 = vsyncpa [#allocation6], 1
    %1808 = vsyncpa [#allocation4], 1

</llo_original>
